<compile_context>
chip_gen: v5e
topology: v5e:2x2
jax: 0.10.0
libtpu: 0.0.40
codegen_flags: <defaults>
</compile_context>

<pallas_src>
import jax
import jax.numpy as jnp
from jax.experimental import pallas as pl
from jax.experimental.pallas import tpu as pltpu

_LANE = 128


def _round_up(v, m):
    return ((v + m - 1) // m) * m


def bottleneck_kernel(x_ref, w1_ref, b1_ref, w2_ref, b2_ref, w3_ref, b3_ref,
                      o_ref, pad_ref):
    # x_ref block: (NB, H, W, Cin_p); all channel dims are multiples of 128.
    NB, H, W, Cin = x_ref.shape
    Cmid = w1_ref.shape[1]
    Cout = w3_ref.shape[1]
    M = NB * H * W
    cdt = x_ref.dtype                      # MXU operand dtype (bf16 stays bf16)

    # ---- conv1: 1x1 conv == channel matmul, bias + ReLU fused --------------
    x2d = x_ref[...].reshape(M, Cin)
    h1 = jnp.dot(x2d, w1_ref[...], preferred_element_type=jnp.float32)
    h1 = jnp.maximum(h1 + b1_ref[...], 0.0).astype(cdt)          # (M, Cmid)

    # ---- conv2: 3x3 conv, padding=1 -----------------------------------------
    # Persistent scratch (NB, H+2, W+2, Cmid): interior + top/bottom pad rows
    # are (re)written every step.  Left/right pad columns are never written
    # and never trusted — those taps are masked after loading.
    zrow = jnp.zeros((NB, 1, W + 2, Cmid), cdt)
    pad_ref[:, 0:1, :, :] = zrow                                  # top pad row
    pad_ref[:, H + 1:H + 2, :, :] = zrow                          # bottom pad row
    pad_ref[:, 1:H + 1, 1:W + 1, :] = h1.reshape(NB, H, W, Cmid)  # interior

    col = jax.lax.broadcasted_iota(jnp.int32, (1, 1, W, 1), 2)
    # Init accumulator with the (broadcast) conv2 bias.
    acc = jnp.broadcast_to(b2_ref[...], (M, Cmid)).astype(jnp.float32)
    for dx in range(3):
        # One sublane-offset load per column tap; row taps below are cheap
        # leading-axis slices of this value (minor (W, C) tiles stay intact).
        slab = pad_ref[:, :, dx:dx + W, :]                        # (NB, H+2, W, Cmid)
        if dx == 0:          # source column x-1 is out of image at x == 0
            slab = jnp.where(col != 0, slab, 0)
        elif dx == 2:        # source column x+1 is out of image at x == W-1
            slab = jnp.where(col != W - 1, slab, 0)
        for dy in range(3):
            patch = slab[:, dy:dy + H, :, :].reshape(M, Cmid)
            acc = acc + jnp.dot(patch, w2_ref[dy, dx],
                                preferred_element_type=jnp.float32)
    h2 = jnp.maximum(acc, 0.0).astype(cdt)                        # (M, Cmid)

    # ---- conv3: 1x1 conv + bias + residual + ReLU ----------------------------
    h3 = jnp.dot(h2, w3_ref[...], preferred_element_type=jnp.float32)
    res = x_ref[...].reshape(M, Cout).astype(jnp.float32)   # re-read: short live range
    out = jnp.maximum(h3 + b3_ref[...] + res, 0.0)
    o_ref[...] = out.reshape(NB, H, W, Cout).astype(o_ref.dtype)


def _pick_images_per_step(n):
    # Batch several images per grid step (amortize ~0.35us/step overhead and
    # grow the MXU M dimension) while preferring an even number of grid steps
    # so a 2-TensorCore chip (v7x) gets a balanced "parallel" grid.
    for nb in (8, 4, 2, 1):
        if n % nb == 0 and (n // nb) % 2 == 0:
            return nb
    for nb in (8, 4, 2, 1):
        if n % nb == 0:
            return nb
    return 1


def bottleneck_pallas(x_nchw, w1, b1, w2, b2, w3, b3):
    """x_nchw: (N, Cin, H, W); conv weights in PyTorch OIHW layout."""
    N, Cin, H, W = x_nchw.shape
    Cmid = w1.shape[0]
    Cout = w3.shape[0]
    assert Cin == Cout, "residual add requires in_channels == out_channels"

    # Lane-dense channel padding (zeros): keeps all 128 lanes busy and makes
    # the output writeback an unmasked store; padded channels stay exactly 0
    # through the whole block and are sliced off at the end.
    Cin_p = _round_up(Cin, _LANE)
    Cmid_p = _round_up(Cmid, _LANE)
    Cout_p = _round_up(Cout, _LANE)
    assert Cin_p == Cout_p

    cdt = x_nchw.dtype
    x = jnp.transpose(x_nchw, (0, 2, 3, 1))                       # NHWC
    x = jnp.pad(x, ((0, 0), (0, 0), (0, 0), (0, Cin_p - Cin)))

    w1m = jnp.pad(jnp.transpose(w1[:, :, 0, 0], (1, 0)),
                  ((0, Cin_p - Cin), (0, Cmid_p - Cmid))).astype(cdt)
    w2m = jnp.pad(jnp.transpose(w2, (2, 3, 1, 0)),                # (kh, kw, I, O)
                  ((0, 0), (0, 0),
                   (0, Cmid_p - Cmid), (0, Cmid_p - Cmid))).astype(cdt)
    w3m = jnp.pad(jnp.transpose(w3[:, :, 0, 0], (1, 0)),
                  ((0, Cmid_p - Cmid), (0, Cout_p - Cout))).astype(cdt)
    b1r = jnp.pad(b1, (0, Cmid_p - Cmid)).astype(jnp.float32).reshape(1, Cmid_p)
    b2r = jnp.pad(b2, (0, Cmid_p - Cmid)).astype(jnp.float32).reshape(1, Cmid_p)
    b3r = jnp.pad(b3, (0, Cout_p - Cout)).astype(jnp.float32).reshape(1, Cout_p)

    NB = _pick_images_per_step(N)

    # Note: at production channel counts the constant weight/bias operands
    # would ideally be single-buffered (pipeline_mode=pl.Buffered(1)) to save
    # VMEM; at these sizes the double-buffer overhead is negligible.
    out_nhwc = pl.pallas_call(
        bottleneck_kernel,
        out_shape=jax.ShapeDtypeStruct((N, H, W, Cout_p), cdt),
        grid_spec=pltpu.PrefetchScalarGridSpec(
            num_scalar_prefetch=0,
            grid=(N // NB,),
            in_specs=[
                pl.BlockSpec((NB, H, W, Cin_p), lambda n: (n, 0, 0, 0)),
                pl.BlockSpec((Cin_p, Cmid_p), lambda n: (0, 0)),
                pl.BlockSpec((1, Cmid_p), lambda n: (0, 0)),
                pl.BlockSpec((3, 3, Cmid_p, Cmid_p), lambda n: (0, 0, 0, 0)),
                pl.BlockSpec((1, Cmid_p), lambda n: (0, 0)),
                pl.BlockSpec((Cmid_p, Cout_p), lambda n: (0, 0)),
                pl.BlockSpec((1, Cout_p), lambda n: (0, 0)),
            ],
            out_specs=pl.BlockSpec((NB, H, W, Cout_p), lambda n: (n, 0, 0, 0)),
            scratch_shapes=[pltpu.VMEM((NB, H + 2, W + 2, Cmid_p), cdt)],
        ),
        compiler_params=pltpu.CompilerParams(
            dimension_semantics=("parallel",)),
    )(x, w1m, b1r, w2m, b2r, w3m, b3r)

    out = out_nhwc[:, :, :, :Cout]                                # drop channel pad
    return jnp.transpose(out, (0, 3, 1, 2))                       # back to NCHW


def bottleneck_reference(x, w1, b1, w2, b2, w3, b3):
    """Pure-JAX NCHW reference matching PyTorch semantics."""
    def conv(inp, w, b, pad):
        y = jax.lax.conv_general_dilated(
            inp, w, window_strides=(1, 1),
            padding=[(pad, pad), (pad, pad)],
            dimension_numbers=("NCHW", "OIHW", "NCHW"))
        return y + b[None, :, None, None]

    out = jax.nn.relu(conv(x, w1, b1, 0))
    out = jax.nn.relu(conv(out, w2, b2, 1))
    out = conv(out, w3, b3, 0)
    return jax.nn.relu(out + x)


if __name__ == "__main__":
    # Small shapes consistent with Bottleneck(in=4, mid=8, out=4)
    N, Cin, Cmid, Cout, H, W = 2, 4, 8, 4, 16, 16

    key = jax.random.PRNGKey(0)
    ks = jax.random.split(key, 7)
    x = jax.random.normal(ks[0], (N, Cin, H, W), jnp.float32)
    # Deterministic parameter init (synthetic weights, PyTorch OIHW layout).
    w1 = jax.random.normal(ks[1], (Cmid, Cin, 1, 1), jnp.float32) * 0.2
    b1 = jax.random.normal(ks[2], (Cmid,), jnp.float32) * 0.1
    w2 = jax.random.normal(ks[3], (Cmid, Cmid, 3, 3), jnp.float32) * 0.1
    b2 = jax.random.normal(ks[4], (Cmid,), jnp.float32) * 0.1
    w3 = jax.random.normal(ks[5], (Cout, Cmid, 1, 1), jnp.float32) * 0.2
    b3 = jax.random.normal(ks[6], (Cout,), jnp.float32) * 0.1

    out = bottleneck_pallas(x, w1, b1, w2, b2, w3, b3)
    out = jax.block_until_ready(out)

    ref = bottleneck_reference(x, w1, b1, w2, b2, w3, b3)
    assert out.shape == (N, Cout, H, W)
    err = float(jnp.max(jnp.abs(out - ref)))
    assert jnp.allclose(out, ref, atol=1e-4, rtol=1e-4), f"max abs err = {err:e}"

    print("KERNEL_OK")
</pallas_src>

<mosaic_0001>
module attributes {stable_mosaic.version = 11 : i64} {
  func.func @bottleneck_kernel(%arg0: i32, %arg1: memref<1x16x16x128xf32, #tpu.memory_space<vmem>>, %arg2: memref<128x128xf32, #tpu.memory_space<vmem>>, %arg3: memref<1x128xf32, #tpu.memory_space<vmem>>, %arg4: memref<3x3x128x128xf32, #tpu.memory_space<vmem>>, %arg5: memref<1x128xf32, #tpu.memory_space<vmem>>, %arg6: memref<128x128xf32, #tpu.memory_space<vmem>>, %arg7: memref<1x128xf32, #tpu.memory_space<vmem>>, %arg8: memref<1x16x16x128xf32, #tpu.memory_space<vmem>>, %arg9: memref<1x18x18x128xf32, #tpu.memory_space<vmem>>) attributes {dimension_semantics = [#tpu.dimension_semantics<parallel>], iteration_bounds = array<i64: 2>, scalar_prefetch = 0 : i64, scratch_operands = 1 : i64, tpu.core_type = #tpu.core_type<tc>, window_params = [{transform_indices = @transform_0, window_bounds = array<i64: 1, 16, 16, 128>}, {pipeline_mode = #tpu.pipeline_mode<synchronous>, transform_indices = @transform_1, window_bounds = array<i64: 128, 128>}, {pipeline_mode = #tpu.pipeline_mode<synchronous>, transform_indices = @transform_2, window_bounds = array<i64: 1, 128>}, {pipeline_mode = #tpu.pipeline_mode<synchronous>, transform_indices = @transform_3, window_bounds = array<i64: 3, 3, 128, 128>}, {pipeline_mode = #tpu.pipeline_mode<synchronous>, transform_indices = @transform_4, window_bounds = array<i64: 1, 128>}, {pipeline_mode = #tpu.pipeline_mode<synchronous>, transform_indices = @transform_5, window_bounds = array<i64: 128, 128>}, {pipeline_mode = #tpu.pipeline_mode<synchronous>, transform_indices = @transform_6, window_bounds = array<i64: 1, 128>}, {transform_indices = @transform_7, window_bounds = array<i64: 1, 16, 16, 128>}]} {
    %c0 = arith.constant 0 : index
    %c0_0 = arith.constant 0 : index
    %c0_1 = arith.constant 0 : index
    %c0_2 = arith.constant 0 : index
    %0 = vector.load %arg1[%c0, %c0_0, %c0_1, %c0_2] : memref<1x16x16x128xf32, #tpu.memory_space<vmem>>, vector<1x16x16x128xf32>
    %1 = vector.shape_cast %0 : vector<1x16x16x128xf32> to vector<256x128xf32>
    %c0_3 = arith.constant 0 : index
    %c0_4 = arith.constant 0 : index
    %2 = vector.load %arg2[%c0_3, %c0_4] : memref<128x128xf32, #tpu.memory_space<vmem>>, vector<128x128xf32>
    %cst = arith.constant dense<0.000000e+00> : vector<256x128xf32>
    %3 = tpu.matmul %1, %2, %cst {dimension_numbers = #tpu.dot_dimension_numbers<[1], [0], [0], [1], [0, 0, 1, 1], [], []>} : vector<256x128xf32>, vector<128x128xf32>, vector<256x128xf32> -> vector<256x128xf32>
    %c0_5 = arith.constant 0 : index
    %c0_6 = arith.constant 0 : index
    %4 = vector.load %arg3[%c0_5, %c0_6] : memref<1x128xf32, #tpu.memory_space<vmem>>, vector<1x128xf32>
    %5 = vector.broadcast %4 : vector<1x128xf32> to vector<256x128xf32>
    %6 = arith.addf %3, %5 : vector<256x128xf32>
    %cst_7 = arith.constant 0.000000e+00 : f32
    %7 = vector.broadcast %cst_7 : f32 to vector<256x128xf32>
    %8 = arith.maximumf %6, %7 : vector<256x128xf32>
    %cst_8 = arith.constant 0.000000e+00 : f32
    %9 = vector.broadcast %cst_8 : f32 to vector<1x1x18x128xf32>
    %c0_9 = arith.constant 0 : index
    %c0_10 = arith.constant 0 : index
    %c0_11 = arith.constant 0 : index
    %c0_12 = arith.constant 0 : index
    %10 = vector.load %arg9[%c0_9, %c0_10, %c0_11, %c0_12] : memref<1x18x18x128xf32, #tpu.memory_space<vmem>>, vector<1x1x18x128xf32>
    tpu.vector_store %arg9[%c0_9, %c0_10, %c0_11, %c0_12], %9 {strides = array<i32>} : memref<1x18x18x128xf32, #tpu.memory_space<vmem>>, vector<1x1x18x128xf32>,
    %c0_13 = arith.constant 0 : index
    %c17 = arith.constant 17 : index
    %c0_14 = arith.constant 0 : index
    %c0_15 = arith.constant 0 : index
    %11 = vector.load %arg9[%c0_13, %c17, %c0_14, %c0_15] : memref<1x18x18x128xf32, #tpu.memory_space<vmem>>, vector<1x1x18x128xf32>
    tpu.vector_store %arg9[%c0_13, %c17, %c0_14, %c0_15], %9 {strides = array<i32>} : memref<1x18x18x128xf32, #tpu.memory_space<vmem>>, vector<1x1x18x128xf32>,
    %12 = vector.shape_cast %8 : vector<256x128xf32> to vector<1x16x16x128xf32>
    %c0_16 = arith.constant 0 : index
    %c1 = arith.constant 1 : index
    %c1_17 = arith.constant 1 : index
    %c0_18 = arith.constant 0 : index
    %13 = vector.load %arg9[%c0_16, %c1, %c1_17, %c0_18] : memref<1x18x18x128xf32, #tpu.memory_space<vmem>>, vector<1x16x16x128xf32>
    tpu.vector_store %arg9[%c0_16, %c1, %c1_17, %c0_18], %12 {strides = array<i32>} : memref<1x18x18x128xf32, #tpu.memory_space<vmem>>, vector<1x16x16x128xf32>,
    %14 = tpu.iota {dimensions = array<i32: 2>} : vector<1x1x16x1xi32>
    %c0_19 = arith.constant 0 : index
    %c0_20 = arith.constant 0 : index
    %15 = vector.load %arg5[%c0_19, %c0_20] : memref<1x128xf32, #tpu.memory_space<vmem>>, vector<1x128xf32>
    %16 = vector.shape_cast %15 : vector<1x128xf32> to vector<1x128xf32>
    %17 = vector.broadcast %16 : vector<1x128xf32> to vector<256x128xf32>
    %c0_21 = arith.constant 0 : index
    %c0_22 = arith.constant 0 : index
    %c0_23 = arith.constant 0 : index
    %c0_24 = arith.constant 0 : index
    %18 = vector.load %arg9[%c0_21, %c0_22, %c0_23, %c0_24] : memref<1x18x18x128xf32, #tpu.memory_space<vmem>>, vector<1x18x16x128xf32>
    %c0_i32 = arith.constant 0 : i32
    %19 = vector.broadcast %c0_i32 : i32 to vector<1x1x16x1xi32>
    %20 = arith.cmpi ne, %14, %19 : vector<1x1x16x1xi32>
    %c0_i32_25 = arith.constant 0 : i32
    %21 = arith.sitofp %c0_i32_25 : i32 to f32
    %22 = vector.shape_cast %20 : vector<1x1x16x1xi1> to vector<1x1x16x1xi1>
    %23 = vector.broadcast %22 : vector<1x1x16x1xi1> to vector<1x18x16x128xi1>
    %24 = vector.broadcast %21 : f32 to vector<1x18x16x128xf32>
    %25 = arith.select %23, %18, %24 : vector<1x18x16x128xi1>, vector<1x18x16x128xf32>
    %26 = vector.extract_strided_slice %25 {offsets = [0, 0, 0, 0], sizes = [1, 16, 16, 128], strides = [1, 1, 1, 1]} : vector<1x18x16x128xf32> to vector<1x16x16x128xf32>
    %27 = vector.shape_cast %26 : vector<1x16x16x128xf32> to vector<256x128xf32>
    %c0_26 = arith.constant 0 : index
    %c0_27 = arith.constant 0 : index
    %c0_28 = arith.constant 0 : index
    %c0_29 = arith.constant 0 : index
    %28 = vector.load %arg4[%c0_26, %c0_27, %c0_28, %c0_29] : memref<3x3x128x128xf32, #tpu.memory_space<vmem>>, vector<1x1x128x128xf32>
    %29 = vector.shape_cast %28 : vector<1x1x128x128xf32> to vector<128x128xf32>
    %cst_30 = arith.constant dense<0.000000e+00> : vector<256x128xf32>
    %30 = tpu.matmul %27, %29, %cst_30 {dimension_numbers = #tpu.dot_dimension_numbers<[1], [0], [0], [1], [0, 0, 1, 1], [], []>} : vector<256x128xf32>, vector<128x128xf32>, vector<256x128xf32> -> vector<256x128xf32>
    %31 = arith.addf %17, %30 : vector<256x128xf32>
    %32 = vector.extract_strided_slice %25 {offsets = [0, 1, 0, 0], sizes = [1, 16, 16, 128], strides = [1, 1, 1, 1]} : vector<1x18x16x128xf32> to vector<1x16x16x128xf32>
    %33 = vector.shape_cast %32 : vector<1x16x16x128xf32> to vector<256x128xf32>
    %c1_31 = arith.constant 1 : index
    %c0_32 = arith.constant 0 : index
    %c0_33 = arith.constant 0 : index
    %c0_34 = arith.constant 0 : index
    %34 = vector.load %arg4[%c1_31, %c0_32, %c0_33, %c0_34] : memref<3x3x128x128xf32, #tpu.memory_space<vmem>>, vector<1x1x128x128xf32>
    %35 = vector.shape_cast %34 : vector<1x1x128x128xf32> to vector<128x128xf32>
    %cst_35 = arith.constant dense<0.000000e+00> : vector<256x128xf32>
    %36 = tpu.matmul %33, %35, %cst_35 {dimension_numbers = #tpu.dot_dimension_numbers<[1], [0], [0], [1], [0, 0, 1, 1], [], []>} : vector<256x128xf32>, vector<128x128xf32>, vector<256x128xf32> -> vector<256x128xf32>
    %37 = arith.addf %31, %36 : vector<256x128xf32>
    %38 = vector.extract_strided_slice %25 {offsets = [0, 2, 0, 0], sizes = [1, 16, 16, 128], strides = [1, 1, 1, 1]} : vector<1x18x16x128xf32> to vector<1x16x16x128xf32>
    %39 = vector.shape_cast %38 : vector<1x16x16x128xf32> to vector<256x128xf32>
    %c2 = arith.constant 2 : index
    %c0_36 = arith.constant 0 : index
    %c0_37 = arith.constant 0 : index
    %c0_38 = arith.constant 0 : index
    %40 = vector.load %arg4[%c2, %c0_36, %c0_37, %c0_38] : memref<3x3x128x128xf32, #tpu.memory_space<vmem>>, vector<1x1x128x128xf32>
    %41 = vector.shape_cast %40 : vector<1x1x128x128xf32> to vector<128x128xf32>
    %cst_39 = arith.constant dense<0.000000e+00> : vector<256x128xf32>
    %42 = tpu.matmul %39, %41, %cst_39 {dimension_numbers = #tpu.dot_dimension_numbers<[1], [0], [0], [1], [0, 0, 1, 1], [], []>} : vector<256x128xf32>, vector<128x128xf32>, vector<256x128xf32> -> vector<256x128xf32>
    %43 = arith.addf %37, %42 : vector<256x128xf32>
    %c0_40 = arith.constant 0 : index
    %c0_41 = arith.constant 0 : index
    %c1_42 = arith.constant 1 : index
    %c0_43 = arith.constant 0 : index
    %44 = vector.load %arg9[%c0_40, %c0_41, %c1_42, %c0_43] : memref<1x18x18x128xf32, #tpu.memory_space<vmem>>, vector<1x18x16x128xf32>
    %45 = vector.extract_strided_slice %44 {offsets = [0, 0, 0, 0], sizes = [1, 16, 16, 128], strides = [1, 1, 1, 1]} : vector<1x18x16x128xf32> to vector<1x16x16x128xf32>
    %46 = vector.shape_cast %45 : vector<1x16x16x128xf32> to vector<256x128xf32>
    %c0_44 = arith.constant 0 : index
    %c1_45 = arith.constant 1 : index
    %c0_46 = arith.constant 0 : index
    %c0_47 = arith.constant 0 : index
    %47 = vector.load %arg4[%c0_44, %c1_45, %c0_46, %c0_47] : memref<3x3x128x128xf32, #tpu.memory_space<vmem>>, vector<1x1x128x128xf32>
    %48 = vector.shape_cast %47 : vector<1x1x128x128xf32> to vector<128x128xf32>
    %cst_48 = arith.constant dense<0.000000e+00> : vector<256x128xf32>
    %49 = tpu.matmul %46, %48, %cst_48 {dimension_numbers = #tpu.dot_dimension_numbers<[1], [0], [0], [1], [0, 0, 1, 1], [], []>} : vector<256x128xf32>, vector<128x128xf32>, vector<256x128xf32> -> vector<256x128xf32>
    %50 = arith.addf %43, %49 : vector<256x128xf32>
    %51 = vector.extract_strided_slice %44 {offsets = [0, 1, 0, 0], sizes = [1, 16, 16, 128], strides = [1, 1, 1, 1]} : vector<1x18x16x128xf32> to vector<1x16x16x128xf32>
    %52 = vector.shape_cast %51 : vector<1x16x16x128xf32> to vector<256x128xf32>
    %c1_49 = arith.constant 1 : index
    %c1_50 = arith.constant 1 : index
    %c0_51 = arith.constant 0 : index
    %c0_52 = arith.constant 0 : index
    %53 = vector.load %arg4[%c1_49, %c1_50, %c0_51, %c0_52] : memref<3x3x128x128xf32, #tpu.memory_space<vmem>>, vector<1x1x128x128xf32>
    %54 = vector.shape_cast %53 : vector<1x1x128x128xf32> to vector<128x128xf32>
    %cst_53 = arith.constant dense<0.000000e+00> : vector<256x128xf32>
    %55 = tpu.matmul %52, %54, %cst_53 {dimension_numbers = #tpu.dot_dimension_numbers<[1], [0], [0], [1], [0, 0, 1, 1], [], []>} : vector<256x128xf32>, vector<128x128xf32>, vector<256x128xf32> -> vector<256x128xf32>
    %56 = arith.addf %50, %55 : vector<256x128xf32>
    %57 = vector.extract_strided_slice %44 {offsets = [0, 2, 0, 0], sizes = [1, 16, 16, 128], strides = [1, 1, 1, 1]} : vector<1x18x16x128xf32> to vector<1x16x16x128xf32>
    %58 = vector.shape_cast %57 : vector<1x16x16x128xf32> to vector<256x128xf32>
    %c2_54 = arith.constant 2 : index
    %c1_55 = arith.constant 1 : index
    %c0_56 = arith.constant 0 : index
    %c0_57 = arith.constant 0 : index
    %59 = vector.load %arg4[%c2_54, %c1_55, %c0_56, %c0_57] : memref<3x3x128x128xf32, #tpu.memory_space<vmem>>, vector<1x1x128x128xf32>
    %60 = vector.shape_cast %59 : vector<1x1x128x128xf32> to vector<128x128xf32>
    %cst_58 = arith.constant dense<0.000000e+00> : vector<256x128xf32>
    %61 = tpu.matmul %58, %60, %cst_58 {dimension_numbers = #tpu.dot_dimension_numbers<[1], [0], [0], [1], [0, 0, 1, 1], [], []>} : vector<256x128xf32>, vector<128x128xf32>, vector<256x128xf32> -> vector<256x128xf32>
    %62 = arith.addf %56, %61 : vector<256x128xf32>
    %c0_59 = arith.constant 0 : index
    %c0_60 = arith.constant 0 : index
    %c2_61 = arith.constant 2 : index
    %c0_62 = arith.constant 0 : index
    %63 = vector.load %arg9[%c0_59, %c0_60, %c2_61, %c0_62] : memref<1x18x18x128xf32, #tpu.memory_space<vmem>>, vector<1x18x16x128xf32>
    %c15_i32 = arith.constant 15 : i32
    %64 = vector.broadcast %c15_i32 : i32 to vector<1x1x16x1xi32>
    %65 = arith.cmpi ne, %14, %64 : vector<1x1x16x1xi32>
    %c0_i32_63 = arith.constant 0 : i32
    %66 = arith.sitofp %c0_i32_63 : i32 to f32
    %67 = vector.shape_cast %65 : vector<1x1x16x1xi1> to vector<1x1x16x1xi1>
    %68 = vector.broadcast %67 : vector<1x1x16x1xi1> to vector<1x18x16x128xi1>
    %69 = vector.broadcast %66 : f32 to vector<1x18x16x128xf32>
    %70 = arith.select %68, %63, %69 : vector<1x18x16x128xi1>, vector<1x18x16x128xf32>
    %71 = vector.extract_strided_slice %70 {offsets = [0, 0, 0, 0], sizes = [1, 16, 16, 128], strides = [1, 1, 1, 1]} : vector<1x18x16x128xf32> to vector<1x16x16x128xf32>
    %72 = vector.shape_cast %71 : vector<1x16x16x128xf32> to vector<256x128xf32>
    %c0_64 = arith.constant 0 : index
    %c2_65 = arith.constant 2 : index
    %c0_66 = arith.constant 0 : index
    %c0_67 = arith.constant 0 : index
    %73 = vector.load %arg4[%c0_64, %c2_65, %c0_66, %c0_67] : memref<3x3x128x128xf32, #tpu.memory_space<vmem>>, vector<1x1x128x128xf32>
    %74 = vector.shape_cast %73 : vector<1x1x128x128xf32> to vector<128x128xf32>
    %cst_68 = arith.constant dense<0.000000e+00> : vector<256x128xf32>
    %75 = tpu.matmul %72, %74, %cst_68 {dimension_numbers = #tpu.dot_dimension_numbers<[1], [0], [0], [1], [0, 0, 1, 1], [], []>} : vector<256x128xf32>, vector<128x128xf32>, vector<256x128xf32> -> vector<256x128xf32>
    %76 = arith.addf %62, %75 : vector<256x128xf32>
    %77 = vector.extract_strided_slice %70 {offsets = [0, 1, 0, 0], sizes = [1, 16, 16, 128], strides = [1, 1, 1, 1]} : vector<1x18x16x128xf32> to vector<1x16x16x128xf32>
    %78 = vector.shape_cast %77 : vector<1x16x16x128xf32> to vector<256x128xf32>
    %c1_69 = arith.constant 1 : index
    %c2_70 = arith.constant 2 : index
    %c0_71 = arith.constant 0 : index
    %c0_72 = arith.constant 0 : index
    %79 = vector.load %arg4[%c1_69, %c2_70, %c0_71, %c0_72] : memref<3x3x128x128xf32, #tpu.memory_space<vmem>>, vector<1x1x128x128xf32>
    %80 = vector.shape_cast %79 : vector<1x1x128x128xf32> to vector<128x128xf32>
    %cst_73 = arith.constant dense<0.000000e+00> : vector<256x128xf32>
    %81 = tpu.matmul %78, %80, %cst_73 {dimension_numbers = #tpu.dot_dimension_numbers<[1], [0], [0], [1], [0, 0, 1, 1], [], []>} : vector<256x128xf32>, vector<128x128xf32>, vector<256x128xf32> -> vector<256x128xf32>
    %82 = arith.addf %76, %81 : vector<256x128xf32>
    %83 = vector.extract_strided_slice %70 {offsets = [0, 2, 0, 0], sizes = [1, 16, 16, 128], strides = [1, 1, 1, 1]} : vector<1x18x16x128xf32> to vector<1x16x16x128xf32>
    %84 = vector.shape_cast %83 : vector<1x16x16x128xf32> to vector<256x128xf32>
    %c2_74 = arith.constant 2 : index
    %c2_75 = arith.constant 2 : index
    %c0_76 = arith.constant 0 : index
    %c0_77 = arith.constant 0 : index
    %85 = vector.load %arg4[%c2_74, %c2_75, %c0_76, %c0_77] : memref<3x3x128x128xf32, #tpu.memory_space<vmem>>, vector<1x1x128x128xf32>
    %86 = vector.shape_cast %85 : vector<1x1x128x128xf32> to vector<128x128xf32>
    %cst_78 = arith.constant dense<0.000000e+00> : vector<256x128xf32>
    %87 = tpu.matmul %84, %86, %cst_78 {dimension_numbers = #tpu.dot_dimension_numbers<[1], [0], [0], [1], [0, 0, 1, 1], [], []>} : vector<256x128xf32>, vector<128x128xf32>, vector<256x128xf32> -> vector<256x128xf32>
    %88 = arith.addf %82, %87 : vector<256x128xf32>
    %cst_79 = arith.constant 0.000000e+00 : f32
    %89 = vector.broadcast %cst_79 : f32 to vector<256x128xf32>
    %90 = arith.maximumf %88, %89 : vector<256x128xf32>
    %c0_80 = arith.constant 0 : index
    %c0_81 = arith.constant 0 : index
    %91 = vector.load %arg6[%c0_80, %c0_81] : memref<128x128xf32, #tpu.memory_space<vmem>>, vector<128x128xf32>
    %cst_82 = arith.constant dense<0.000000e+00> : vector<256x128xf32>
    %92 = tpu.matmul %90, %91, %cst_82 {dimension_numbers = #tpu.dot_dimension_numbers<[1], [0], [0], [1], [0, 0, 1, 1], [], []>} : vector<256x128xf32>, vector<128x128xf32>, vector<256x128xf32> -> vector<256x128xf32>
    %c0_83 = arith.constant 0 : index
    %c0_84 = arith.constant 0 : index
    %c0_85 = arith.constant 0 : index
    %c0_86 = arith.constant 0 : index
    %93 = vector.load %arg1[%c0_83, %c0_84, %c0_85, %c0_86] : memref<1x16x16x128xf32, #tpu.memory_space<vmem>>, vector<1x16x16x128xf32>
    %94 = vector.shape_cast %93 : vector<1x16x16x128xf32> to vector<256x128xf32>
    %c0_87 = arith.constant 0 : index
    %c0_88 = arith.constant 0 : index
    %95 = vector.load %arg7[%c0_87, %c0_88] : memref<1x128xf32, #tpu.memory_space<vmem>>, vector<1x128xf32>
    %96 = vector.broadcast %95 : vector<1x128xf32> to vector<256x128xf32>
    %97 = arith.addf %92, %96 : vector<256x128xf32>
    %98 = arith.addf %97, %94 : vector<256x128xf32>
    %cst_89 = arith.constant 0.000000e+00 : f32
    %99 = vector.broadcast %cst_89 : f32 to vector<256x128xf32>
    %100 = arith.maximumf %98, %99 : vector<256x128xf32>
    %101 = vector.shape_cast %100 : vector<256x128xf32> to vector<1x16x16x128xf32>
    %c0_90 = arith.constant 0 : index
    %c0_91 = arith.constant 0 : index
    %c0_92 = arith.constant 0 : index
    %c0_93 = arith.constant 0 : index
    %102 = vector.load %arg8[%c0_90, %c0_91, %c0_92, %c0_93] : memref<1x16x16x128xf32, #tpu.memory_space<vmem>>, vector<1x16x16x128xf32>
    tpu.vector_store %arg8[%c0_90, %c0_91, %c0_92, %c0_93], %101 {strides = array<i32>} : memref<1x16x16x128xf32, #tpu.memory_space<vmem>>, vector<1x16x16x128xf32>,
    return
  }
  func.func @transform_0(%arg0: i32) -> (i32, i32, i32, i32) {
    %c0_i32 = arith.constant 0 : i32
    %c0_i32_0 = arith.constant 0 : i32
    %c0_i32_1 = arith.constant 0 : i32
    %c0_i32_2 = arith.constant 0 : i32
    return %arg0, %c0_i32, %c0_i32_0, %c0_i32_1 : i32, i32, i32, i32
  }
  func.func @transform_1(%arg0: i32) -> (i32, i32) {
    %c0_i32 = arith.constant 0 : i32
    %c0_i32_0 = arith.constant 0 : i32
    %c0_i32_1 = arith.constant 0 : i32
    return %c0_i32, %c0_i32_0 : i32, i32
  }
  func.func @transform_2(%arg0: i32) -> (i32, i32) {
    %c0_i32 = arith.constant 0 : i32
    %c0_i32_0 = arith.constant 0 : i32
    %c0_i32_1 = arith.constant 0 : i32
    return %c0_i32, %c0_i32_0 : i32, i32
  }
  func.func @transform_3(%arg0: i32) -> (i32, i32, i32, i32) {
    %c0_i32 = arith.constant 0 : i32
    %c0_i32_0 = arith.constant 0 : i32
    %c0_i32_1 = arith.constant 0 : i32
    %c0_i32_2 = arith.constant 0 : i32
    %c0_i32_3 = arith.constant 0 : i32
    return %c0_i32, %c0_i32_0, %c0_i32_1, %c0_i32_2 : i32, i32, i32, i32
  }
  func.func @transform_4(%arg0: i32) -> (i32, i32) {
    %c0_i32 = arith.constant 0 : i32
    %c0_i32_0 = arith.constant 0 : i32
    %c0_i32_1 = arith.constant 0 : i32
    return %c0_i32, %c0_i32_0 : i32, i32
  }
  func.func @transform_5(%arg0: i32) -> (i32, i32) {
    %c0_i32 = arith.constant 0 : i32
    %c0_i32_0 = arith.constant 0 : i32
    %c0_i32_1 = arith.constant 0 : i32
    return %c0_i32, %c0_i32_0 : i32, i32
  }
  func.func @transform_6(%arg0: i32) -> (i32, i32) {
    %c0_i32 = arith.constant 0 : i32
    %c0_i32_0 = arith.constant 0 : i32
    %c0_i32_1 = arith.constant 0 : i32
    return %c0_i32, %c0_i32_0 : i32, i32
  }
  func.func @transform_7(%arg0: i32) -> (i32, i32, i32, i32) {
    %c0_i32 = arith.constant 0 : i32
    %c0_i32_0 = arith.constant 0 : i32
    %c0_i32_1 = arith.constant 0 : i32
    %c0_i32_2 = arith.constant 0 : i32
    return %arg0, %c0_i32, %c0_i32_0, %c0_i32_1 : i32, i32, i32, i32
  }
}

</mosaic_0001>

<llo_original>
// kernel: tpu_custom_call.1
$region0: #{tpu_custom_call.1}
  #allocation0 [shape = 'u32[]', space=smem, size = 0x4, offset = 0x4, fixed_abs, tag = 'smem constant byte address 0x4 - core index']
  #allocation1 [shape = 'u32[72,128]{1,0:T(1,128)}', space=vmem, size = 0x9000, scoped, tag = 'internal scratch']
  #allocation2 [shape = 'f32[1,18,18,128]{3,2,1,0:T(8,128)}', space=vmem, size = 0x36000, scoped, tag = 'scratch operand']
  %s0 = inlined_call_operand.hbm [shape: f32[2,16,16,128], index: 0, kind: input, shape index: {}]
  %s1 = inlined_call_operand.hbm [shape: f32[128,128], index: 1, kind: input, shape index: {}]
  %s2 = inlined_call_operand.vmem [shape: f32[1,128], index: 2, kind: input, shape index: {}]
  %s3 = inlined_call_operand.hbm [shape: f32[3,3,128,128], index: 3, kind: input, shape index: {}]
  %s4 = inlined_call_operand.vmem [shape: f32[1,128], index: 4, kind: input, shape index: {}]
  %s5 = inlined_call_operand.hbm [shape: f32[128,128], index: 5, kind: input, shape index: {}]
  %s6 = inlined_call_operand.vmem [shape: f32[1,128], index: 6, kind: input, shape index: {}]
  %s7 = inlined_call_operand.hbm [shape: f32[2,16,16,128], index: 7, kind: output, shape index: {}]
  %s8 = sld [smem:[#allocation0]]
  $region77: #{tpu_custom_call.1} parent=0
    _
  %s10 = ssub.s32 1, %s8
  %s11 = scalar_select 0, %s10, %s8
  $region1: #{tpu_custom_call.1} parent=0
    #allocation3 [shape = 'u8[262144]{0}', space=vmem, size = 0x40000, scoped, tag = 'input window, operand 0']
    #allocation4 [shape = 's32[2]{0}', space=sflag, size = 0x8, scoped, tag = 'scoped memory for tpu_custom_call.1']
    #allocation5 [shape = 's32[2]{0}', space=sflag, size = 0x8, scoped, tag = 'scoped memory for tpu_custom_call.1']
    #allocation6 [shape = 'u8[65536]{0}', space=vmem, size = 0x10000, scoped, tag = 'input window, operand 1, single buffered']
    #allocation7 [shape = 's32[1]{0}', space=sflag, size = 0x4, scoped, tag = 'scoped memory for tpu_custom_call.1']
    #allocation8 [shape = 'u8[589824]{0}', space=vmem, size = 0x90000, scoped, tag = 'input window, operand 3, single buffered']
    #allocation9 [shape = 'u8[65536]{0}', space=vmem, size = 0x10000, scoped, tag = 'input window, operand 5, single buffered']
    #allocation10 [shape = 's32[1]{0}', space=sflag, size = 0x4, scoped, tag = 'scoped memory for tpu_custom_call.1']
    #allocation11 [shape = 'u8[262144]{0}', space=vmem, size = 0x40000, scoped, tag = 'output window, operand 0']
    %12 = vsyncpa [#allocation4], 0
    %s13 = scalar_lea.sflag [#allocation4], 1
    %14 = vsyncpa %s13, 0
    %15 = vsyncpa [#allocation7], 0
    %16 = vsyncpa [#allocation10], 0
    %17 = vsyncpa [#allocation5], 0
    %s18 = scalar_lea.sflag [#allocation5], 1
    %19 = vsyncpa %s18, 0
    loop: start=0, step=1, limit=4
    $region2: #{tpu_custom_call.1} parent=1 // loop_pre_header
      _
    $region3: #{tpu_custom_call.1} parent=1 // loop_header
      %s21 = sphi 0, %s25
      %p22 = scmp.ge.s32.totalorder %s21, 4
      %s31 = sphi 0, %s33
      %s34 = sphi 0, %s31
      %s35 = sphi 0, %s34
      %s51 = sphi 0, %s35
      %s55 = sphi 0, %s55
      %s57 = sphi 0, %s55
      %s58 = sphi 0, %s57
      %s72 = sphi 0, %s58
      %s76 = sphi 0, %s76
      %s78 = sphi 0, %s76
      %s79 = sphi 0, %s78
      %s93 = sphi 0, %s79
      %s97 = sphi 0, %s97
      %s99 = sphi 0, %s97
      %s100 = sphi 0, %s99
      %s114 = sphi 0, %s100
      %s118 = sphi 0, %s118
      %s120 = sphi 0, %s118
      %s121 = sphi 0, %s120
      %s135 = sphi 0, %s121
      %s139 = sphi 0, %s139
      %s141 = sphi 0, %s139
      %s142 = sphi 0, %s141
      %s156 = sphi 0, %s142
      %s160 = sphi 0, %s160
      %s162 = sphi 0, %s160
      %s163 = sphi 0, %s162
      %s177 = sphi 0, %s163
      %s183 = sphi 0, %s185
      %s186 = sphi 0, %s183
      %s187 = sphi 0, %s186
      %s203 = sphi 0, %s187
    $region4: #{tpu_custom_call.1} parent=1 // loop_header_branch
      %24 = sbr.rel (%p22) target = $region8
    $region5: #{tpu_custom_call.1} parent=1 // loop_body
      %s26 = ssub.s32 %s21, 1
      %s27 = ssub.s32 %s21, 2
      %s28 = sadd.s32 %s21, 1
      %s29 = ssub.s32 %s21, %s28
      %p30 = scmp.eq.s32.totalorder %s29, 0
      %s32 = sadd.s32 %s31, 1
      %s33 = scalar_select %p30, %s31, %s32
      %p36 = pneg %p30
      %p37 = scmp.eq.s32.totalorder %s21, 1
      %p38 = por %p36, %p37
      %p39 = scmp.ne.s32.totalorder %s31, %s34
      %p40 = scmp.eq.s32.totalorder %s21, 0
      %p41 = por %p39, %p40
      %p42 = scmp.ne.s32.totalorder %s31, %s34
      %p43 = scmp.eq.s32.totalorder %s26, 1
      %p44 = por %p42, %p43
      %p45 = scmp.ne.s32.totalorder %s34, %s35
      %p46 = scmp.eq.s32.totalorder %s26, 0
      %p47 = por %p45, %p46
      %p48 = scmp.ne.s32.totalorder %s34, %s35
      %p49 = scmp.eq.s32.totalorder %s27, 1
      %p50 = por %p48, %p49
      %p52 = scmp.ne.s32.totalorder %s35, %s51
      %p53 = scmp.eq.s32.totalorder %s27, 0
      %p54 = por %p52, %p53
      %s56 = sadd.s32 %s55, 1
      %p59 = scmp.eq.s32.totalorder %s21, 1
      %p60 = scmp.ne.s32.totalorder %s55, %s57
      %p61 = scmp.eq.s32.totalorder %s21, 0
      %p62 = por %p60, %p61
      %p63 = scmp.ne.s32.totalorder %s55, %s57
      %p64 = scmp.eq.s32.totalorder %s26, 1
      %p65 = por %p63, %p64
      %p66 = scmp.ne.s32.totalorder %s57, %s58
      %p67 = scmp.eq.s32.totalorder %s26, 0
      %p68 = por %p66, %p67
      %p69 = scmp.ne.s32.totalorder %s57, %s58
      %p70 = scmp.eq.s32.totalorder %s27, 1
      %p71 = por %p69, %p70
      %p73 = scmp.ne.s32.totalorder %s58, %s72
      %p74 = scmp.eq.s32.totalorder %s27, 0
      %p75 = por %p73, %p74
      %s77 = sadd.s32 %s76, 1
      %p80 = scmp.eq.s32.totalorder %s21, 1
      %p81 = scmp.ne.s32.totalorder %s76, %s78
      %p82 = scmp.eq.s32.totalorder %s21, 0
      %p83 = por %p81, %p82
      %p84 = scmp.ne.s32.totalorder %s76, %s78
      %p85 = scmp.eq.s32.totalorder %s26, 1
      %p86 = por %p84, %p85
      %p87 = scmp.ne.s32.totalorder %s78, %s79
      %p88 = scmp.eq.s32.totalorder %s26, 0
      %p89 = por %p87, %p88
      %p90 = scmp.ne.s32.totalorder %s78, %s79
      %p91 = scmp.eq.s32.totalorder %s27, 1
      %p92 = por %p90, %p91
      %p94 = scmp.ne.s32.totalorder %s79, %s93
      %p95 = scmp.eq.s32.totalorder %s27, 0
      %p96 = por %p94, %p95
      %s98 = sadd.s32 %s97, 1
      %p101 = scmp.eq.s32.totalorder %s21, 1
      %p102 = scmp.ne.s32.totalorder %s97, %s99
      %p103 = scmp.eq.s32.totalorder %s21, 0
      %p104 = por %p102, %p103
      %p105 = scmp.ne.s32.totalorder %s97, %s99
      %p106 = scmp.eq.s32.totalorder %s26, 1
      %p107 = por %p105, %p106
      %p108 = scmp.ne.s32.totalorder %s99, %s100
      %p109 = scmp.eq.s32.totalorder %s26, 0
      %p110 = por %p108, %p109
      %p111 = scmp.ne.s32.totalorder %s99, %s100
      %p112 = scmp.eq.s32.totalorder %s27, 1
      %p113 = por %p111, %p112
      %p115 = scmp.ne.s32.totalorder %s100, %s114
      %p116 = scmp.eq.s32.totalorder %s27, 0
      %p117 = por %p115, %p116
      %s119 = sadd.s32 %s118, 1
      %p122 = scmp.eq.s32.totalorder %s21, 1
      %p123 = scmp.ne.s32.totalorder %s118, %s120
      %p124 = scmp.eq.s32.totalorder %s21, 0
      %p125 = por %p123, %p124
      %p126 = scmp.ne.s32.totalorder %s118, %s120
      %p127 = scmp.eq.s32.totalorder %s26, 1
      %p128 = por %p126, %p127
      %p129 = scmp.ne.s32.totalorder %s120, %s121
      %p130 = scmp.eq.s32.totalorder %s26, 0
      %p131 = por %p129, %p130
      %p132 = scmp.ne.s32.totalorder %s120, %s121
      %p133 = scmp.eq.s32.totalorder %s27, 1
      %p134 = por %p132, %p133
      %p136 = scmp.ne.s32.totalorder %s121, %s135
      %p137 = scmp.eq.s32.totalorder %s27, 0
      %p138 = por %p136, %p137
      %s140 = sadd.s32 %s139, 1
      %p143 = scmp.eq.s32.totalorder %s21, 1
      %p144 = scmp.ne.s32.totalorder %s139, %s141
      %p145 = scmp.eq.s32.totalorder %s21, 0
      %p146 = por %p144, %p145
      %p147 = scmp.ne.s32.totalorder %s139, %s141
      %p148 = scmp.eq.s32.totalorder %s26, 1
      %p149 = por %p147, %p148
      %p150 = scmp.ne.s32.totalorder %s141, %s142
      %p151 = scmp.eq.s32.totalorder %s26, 0
      %p152 = por %p150, %p151
      %p153 = scmp.ne.s32.totalorder %s141, %s142
      %p154 = scmp.eq.s32.totalorder %s27, 1
      %p155 = por %p153, %p154
      %p157 = scmp.ne.s32.totalorder %s142, %s156
      %p158 = scmp.eq.s32.totalorder %s27, 0
      %p159 = por %p157, %p158
      %s161 = sadd.s32 %s160, 1
      %p164 = scmp.eq.s32.totalorder %s21, 1
      %p165 = scmp.ne.s32.totalorder %s160, %s162
      %p166 = scmp.eq.s32.totalorder %s21, 0
      %p167 = por %p165, %p166
      %p168 = scmp.ne.s32.totalorder %s160, %s162
      %p169 = scmp.eq.s32.totalorder %s26, 1
      %p170 = por %p168, %p169
      %p171 = scmp.ne.s32.totalorder %s162, %s163
      %p172 = scmp.eq.s32.totalorder %s26, 0
      %p173 = por %p171, %p172
      %p174 = scmp.ne.s32.totalorder %s162, %s163
      %p175 = scmp.eq.s32.totalorder %s27, 1
      %p176 = por %p174, %p175
      %p178 = scmp.ne.s32.totalorder %s163, %s177
      %p179 = scmp.eq.s32.totalorder %s27, 0
      %p180 = por %p178, %p179
      %s181 = ssub.s32 %s21, %s28
      %p182 = scmp.eq.s32.totalorder %s181, 0
      %s184 = sadd.s32 %s183, 1
      %s185 = scalar_select %p182, %s183, %s184
      %p188 = pneg %p182
      %p189 = scmp.eq.s32.totalorder %s21, 1
      %p190 = por %p188, %p189
      %p191 = scmp.ne.s32.totalorder %s183, %s186
      %p192 = scmp.eq.s32.totalorder %s21, 0
      %p193 = por %p191, %p192
      %p194 = scmp.ne.s32.totalorder %s183, %s186
      %p195 = scmp.eq.s32.totalorder %s26, 1
      %p196 = por %p194, %p195
      %p197 = scmp.ne.s32.totalorder %s186, %s187
      %p198 = scmp.eq.s32.totalorder %s26, 0
      %p199 = por %p197, %p198
      %p200 = scmp.ne.s32.totalorder %s186, %s187
      %p201 = scmp.eq.s32.totalorder %s27, 1
      %p202 = por %p200, %p201
      %p204 = scmp.ne.s32.totalorder %s187, %s203
      %p205 = scmp.eq.s32.totalorder %s27, 0
      %p206 = por %p204, %p205
      %p207 = scmp.le.s32.totalorder 1, %s21
      %p208 = scmp.lt.s32.totalorder %s21, 3
      %p209 = pnand %p207, %p208
      %p210 = pneg %p209
      // Predicated region
      $region9: #{tpu_custom_call.1} parent=5 // pred_check
        _
      $region10: #{tpu_custom_call.1} parent=5 // pred_check_branch
        %212 = sbr.rel (%p209) target = $region12
      $region11: #{tpu_custom_call.1} parent=5 // pred_region
        %s213 = ssub.s32 %s21, 1
        // Predicated region
        $region13: #{tpu_custom_call.1} parent=11 // pred_check
          %p214 = pneg %p68
        $region14: #{tpu_custom_call.1} parent=11 // pred_check_branch
          %216 = sbr.rel (%p214) target = $region16
        $region15: #{tpu_custom_call.1} parent=11 // pred_region
          %218 = vsyncadd [#allocation7], 0
          %s219 = sshll.u32 %s1, 4
          %s220 = int_to_ptr.hbm [resolvable:$true] %s219
          %s221 = sshll.u32 [#allocation6], 4
          %s222 = int_to_ptr.vmem [resolvable:$true] %s221
          %227 = dma.hbm_to_vmem [thread:$0]  %s220, 2048, %s222, [#allocation7], 128, 128, 8
        $region16: #{tpu_custom_call.1} parent=11 // pred_fallthru
          _
        // Predicated region
        $region17: #{tpu_custom_call.1} parent=11 // pred_check
          %p228 = pneg %p89
        $region18: #{tpu_custom_call.1} parent=11 // pred_check_branch
          %230 = sbr.rel (%p228) target = $region20
        $region19: #{tpu_custom_call.1} parent=11 // pred_region
          _
        $region20: #{tpu_custom_call.1} parent=11 // pred_fallthru
          _
        // Predicated region
        $region21: #{tpu_custom_call.1} parent=11 // pred_check
          %p231 = pneg %p110
        $region22: #{tpu_custom_call.1} parent=11 // pred_check_branch
          %233 = sbr.rel (%p231) target = $region24
        $region23: #{tpu_custom_call.1} parent=11 // pred_region
          %235 = vsyncadd [#allocation7], 0
          %s236 = sshll.u32 %s3, 4
          %s237 = int_to_ptr.hbm [resolvable:$true] %s236
          %s238 = sshll.u32 [#allocation8], 4
          %s239 = int_to_ptr.vmem [resolvable:$true] %s238
          %244 = dma.hbm_to_vmem [thread:$0]  %s237, 18432, %s239, [#allocation7], 128, 128, 8
        $region24: #{tpu_custom_call.1} parent=11 // pred_fallthru
          _
        // Predicated region
        $region25: #{tpu_custom_call.1} parent=11 // pred_check
          %p245 = pneg %p131
        $region26: #{tpu_custom_call.1} parent=11 // pred_check_branch
          %247 = sbr.rel (%p245) target = $region28
        $region27: #{tpu_custom_call.1} parent=11 // pred_region
          _
        $region28: #{tpu_custom_call.1} parent=11 // pred_fallthru
          _
        // Predicated region
        $region29: #{tpu_custom_call.1} parent=11 // pred_check
          %p248 = pneg %p152
        $region30: #{tpu_custom_call.1} parent=11 // pred_check_branch
          %250 = sbr.rel (%p248) target = $region32
        $region31: #{tpu_custom_call.1} parent=11 // pred_region
          %252 = vsyncadd [#allocation10], 0
          %s253 = sshll.u32 %s5, 4
          %s254 = int_to_ptr.hbm [resolvable:$true] %s253
          %s255 = sshll.u32 [#allocation9], 4
          %s256 = int_to_ptr.vmem [resolvable:$true] %s255
          %261 = dma.hbm_to_vmem [thread:$0]  %s254, 2048, %s256, [#allocation10], 128, 128, 8
        $region32: #{tpu_custom_call.1} parent=11 // pred_fallthru
          _
        // Predicated region
        $region33: #{tpu_custom_call.1} parent=11 // pred_check
          %p262 = pneg %p173
        $region34: #{tpu_custom_call.1} parent=11 // pred_check_branch
          %264 = sbr.rel (%p262) target = $region36
        $region35: #{tpu_custom_call.1} parent=11 // pred_region
          _
        $region36: #{tpu_custom_call.1} parent=11 // pred_fallthru
          _
      $region12: #{tpu_custom_call.1} parent=5 // pred_fallthru
        _
      %p265 = scmp.lt.s32.totalorder %s21, 2
      // Predicated region
      $region37: #{tpu_custom_call.1} parent=5 // pred_check
        %p266 = pneg %p265
      $region38: #{tpu_custom_call.1} parent=5 // pred_check_branch
        %268 = sbr.rel (%p266) target = $region40
      $region39: #{tpu_custom_call.1} parent=5 // pred_region
        // Predicated region
        $region41: #{tpu_custom_call.1} parent=39 // pred_check
          %p269 = pneg %p41
        $region42: #{tpu_custom_call.1} parent=39 // pred_check_branch
          %271 = sbr.rel (%p269) target = $region44
        $region43: #{tpu_custom_call.1} parent=39 // pred_region
          %s272 = sand.u32 %s31, 1
          %s273 = scalar_lea.sflag [#allocation4], %s272
          %s274 = sand.u32 %s31, 1
          %s275 = smul.addr %s274, 256
          %s276 = scalar_lea.vmem [#allocation3], %s275
          %278 = vsyncadd %s273, 0
          %s279 = smul.addr %s21, 32
          %s280 = smul.addr %s279, 8
          %s281 = scalar_lea.hbm %s0, %s280
          %s282 = sshll.u32 %s281, 4
          %s283 = int_to_ptr.hbm [resolvable:$true] %s282
          %s284 = sshll.u32 %s276, 4
          %s285 = int_to_ptr.vmem [resolvable:$true] %s284
          %290 = dma.hbm_to_vmem [thread:$0]  %s283, 4096, %s285, %s273, 128, 128, 8
        $region44: #{tpu_custom_call.1} parent=39 // pred_fallthru
          _
      $region40: #{tpu_custom_call.1} parent=5 // pred_fallthru
        _
      %p291 = scmp.le.s32.totalorder 1, %s21
      %p292 = scmp.lt.s32.totalorder %s21, 3
      %p293 = pnand %p291, %p292
      %p294 = pneg %p293
      // Predicated region
      $region45: #{tpu_custom_call.1} parent=5 // pred_check
        _
      $region46: #{tpu_custom_call.1} parent=5 // pred_check_branch
        %296 = sbr.rel (%p293) target = $region48
      $region47: #{tpu_custom_call.1} parent=5 // pred_region
        %s297 = ssub.s32 %s21, 1
        %s298 = sand.u32 %s34, 1
        %s299 = scalar_lea.sflag [#allocation4], %s298
        %s300 = sand.u32 %s34, 1
        %s301 = smul.addr %s300, 256
        %s302 = scalar_lea.vmem [#allocation3], %s301
        // Predicated region
        $region49: #{tpu_custom_call.1} parent=47 // pred_check
          %p303 = pneg %p47
        $region50: #{tpu_custom_call.1} parent=47 // pred_check_branch
          %305 = sbr.rel (%p303) target = $region52
        $region51: #{tpu_custom_call.1} parent=47 // pred_region
          %307 = dma.done %s299, 4096
        $region52: #{tpu_custom_call.1} parent=47 // pred_fallthru
          _
        // Predicated region
        $region53: #{tpu_custom_call.1} parent=47 // pred_check
          %p308 = pneg %p68
        $region54: #{tpu_custom_call.1} parent=47 // pred_check_branch
          %310 = sbr.rel (%p308) target = $region56
        $region55: #{tpu_custom_call.1} parent=47 // pred_region
          %312 = dma.done [#allocation7], 2048
        $region56: #{tpu_custom_call.1} parent=47 // pred_fallthru
          _
        // Predicated region
        $region57: #{tpu_custom_call.1} parent=47 // pred_check
          %p313 = pneg %p110
        $region58: #{tpu_custom_call.1} parent=47 // pred_check_branch
          %315 = sbr.rel (%p313) target = $region60
        $region59: #{tpu_custom_call.1} parent=47 // pred_region
          %317 = dma.done [#allocation7], 18432
        $region60: #{tpu_custom_call.1} parent=47 // pred_fallthru
          _
        // Predicated region
        $region61: #{tpu_custom_call.1} parent=47 // pred_check
          %p318 = pneg %p152
        $region62: #{tpu_custom_call.1} parent=47 // pred_check_branch
          %320 = sbr.rel (%p318) target = $region64
        $region63: #{tpu_custom_call.1} parent=47 // pred_region
          %322 = dma.done [#allocation10], 2048
        $region64: #{tpu_custom_call.1} parent=47 // pred_fallthru
          _
        %s323 = sand.u32 %s34, 1
        %s324 = scalar_lea.sflag [#allocation4], %s323
        %s325 = sand.u32 %s34, 1
        %s326 = smul.addr %s325, 256
        %s327 = scalar_lea.vmem [#allocation3], %s326
        %p328 = pneg %p47
        %p329 = pneg %p44
        %p330 = pneg %p68
        %p331 = pneg %p65
        %p332 = pneg %p89
        %p333 = pneg %p86
        %p334 = pneg %p110
        %p335 = pneg %p107
        %p336 = pneg %p131
        %p337 = pneg %p128
        %p338 = pneg %p152
        %p339 = pneg %p149
        %p340 = pneg %p173
        %p341 = pneg %p170
        %p342 = pneg %p199
        %p343 = pneg %p196
        %s344 = sand.u32 %s186, 1
        %s345 = scalar_lea.sflag [#allocation5], %s344
        %s346 = sand.u32 %s186, 1
        %s347 = smul.addr %s346, 256
        %s348 = scalar_lea.vmem [#allocation11], %s347
        %v349 = vld [vmem:[%s302] sm:$0xff]
        %v350 = vld [vmem:[%s302 + $0x8] sm:$0xff]
        %v351 = vld [vmem:[%s302 + $0x10] sm:$0xff]
        %v352 = vld [vmem:[%s302 + $0x18] sm:$0xff]
        %v353 = vld [vmem:[%s302 + $0x20] sm:$0xff]
        %v354 = vld [vmem:[%s302 + $0x28] sm:$0xff]
        %v355 = vld [vmem:[%s302 + $0x30] sm:$0xff]
        %v356 = vld [vmem:[%s302 + $0x38] sm:$0xff]
        %v357 = vld [vmem:[%s302 + $0x40] sm:$0xff]
        %v358 = vld [vmem:[%s302 + $0x48] sm:$0xff]
        %v359 = vld [vmem:[%s302 + $0x50] sm:$0xff]
        %v360 = vld [vmem:[%s302 + $0x58] sm:$0xff]
        %v361 = vld [vmem:[%s302 + $0x60] sm:$0xff]
        %v362 = vld [vmem:[%s302 + $0x68] sm:$0xff]
        %v363 = vld [vmem:[%s302 + $0x70] sm:$0xff]
        %v364 = vld [vmem:[%s302 + $0x78] sm:$0xff]
        %v365 = vld [vmem:[%s302 + $0x80] sm:$0xff]
        %v366 = vld [vmem:[%s302 + $0x88] sm:$0xff]
        %v367 = vld [vmem:[%s302 + $0x90] sm:$0xff]
        %v368 = vld [vmem:[%s302 + $0x98] sm:$0xff]
        %v369 = vld [vmem:[%s302 + $0xa0] sm:$0xff]
        %v370 = vld [vmem:[%s302 + $0xa8] sm:$0xff]
        %v371 = vld [vmem:[%s302 + $0xb0] sm:$0xff]
        %v372 = vld [vmem:[%s302 + $0xb8] sm:$0xff]
        %v373 = vld [vmem:[%s302 + $0xc0] sm:$0xff]
        %v374 = vld [vmem:[%s302 + $0xc8] sm:$0xff]
        %v375 = vld [vmem:[%s302 + $0xd0] sm:$0xff]
        %v376 = vld [vmem:[%s302 + $0xd8] sm:$0xff]
        %v377 = vld [vmem:[%s302 + $0xe0] sm:$0xff]
        %v378 = vld [vmem:[%s302 + $0xe8] sm:$0xff]
        %v379 = vld [vmem:[%s302 + $0xf0] sm:$0xff]
        %v380 = vld [vmem:[%s302 + $0xf8] sm:$0xff]
        %v381 = vld [vmem:[#allocation6] sm:$0xff]
        %v382 = vld [vmem:[#allocation6 + $0x8] sm:$0xff]
        %v383 = vld [vmem:[#allocation6 + $0x10] sm:$0xff]
        %v384 = vld [vmem:[#allocation6 + $0x18] sm:$0xff]
        %v385 = vld [vmem:[#allocation6 + $0x20] sm:$0xff]
        %v386 = vld [vmem:[#allocation6 + $0x28] sm:$0xff]
        %v387 = vld [vmem:[#allocation6 + $0x30] sm:$0xff]
        %v388 = vld [vmem:[#allocation6 + $0x38] sm:$0xff]
        %v389 = vld [vmem:[#allocation6 + $0x40] sm:$0xff]
        %v390 = vld [vmem:[#allocation6 + $0x48] sm:$0xff]
        %v391 = vld [vmem:[#allocation6 + $0x50] sm:$0xff]
        %v392 = vld [vmem:[#allocation6 + $0x58] sm:$0xff]
        %v393 = vld [vmem:[#allocation6 + $0x60] sm:$0xff]
        %v394 = vld [vmem:[#allocation6 + $0x68] sm:$0xff]
        %v395 = vld [vmem:[#allocation6 + $0x70] sm:$0xff]
        %v396 = vld [vmem:[#allocation6 + $0x78] sm:$0xff]
        %v397 = vld [vmem:[%s2] sm:$0x1]
        %v399 = vperm.slane %v397, 0
        %401 = vmatpush.msra.mxu0 %v396
        %402 = vmatpush.msra.mxu0 %v395
        %403 = vmatpush.msra.mxu0 %v394
        %404 = vmatpush.msra.mxu0 %v393
        %405 = vmatpush.msra.mxu0 %v392
        %406 = vmatpush.msra.mxu0 %v391
        %407 = vmatpush.msra.mxu0 %v390
        %408 = vmatpush.msra.mxu0 %v389
        %409 = vmatpush.msra.mxu0 %v388
        %410 = vmatpush.msra.mxu0 %v387
        %411 = vmatpush.msra.mxu0 %v386
        %412 = vmatpush.msra.mxu0 %v385
        %413 = vmatpush.msra.mxu0 %v384
        %414 = vmatpush.msra.mxu0 %v383
        %415 = vmatpush.msra.mxu0 %v382
        %416 = vmatpush.msra.mxu0 %v381
        %417 = vmatmul.f32.gmra.mxu0 %v349
        %v418 = vpop.f32.mrf.mxu0
        %v419 = vadd.f32 %v399, %v418
        %420 = vmatmul.f32.gmra.mxu0 %v350
        %v421 = vpop.f32.mrf.mxu0
        %v422 = vadd.f32 %v399, %v421
        %423 = vmatmul.f32.gmra.mxu0 %v351
        %v424 = vpop.f32.mrf.mxu0
        %v425 = vadd.f32 %v399, %v424
        %426 = vmatmul.f32.gmra.mxu0 %v352
        %v427 = vpop.f32.mrf.mxu0
        %v428 = vadd.f32 %v399, %v427
        %429 = vmatmul.f32.gmra.mxu0 %v353
        %v430 = vpop.f32.mrf.mxu0
        %v431 = vadd.f32 %v399, %v430
        %432 = vmatmul.f32.gmra.mxu0 %v354
        %v433 = vpop.f32.mrf.mxu0
        %v434 = vadd.f32 %v399, %v433
        %435 = vmatmul.f32.gmra.mxu0 %v355
        %v436 = vpop.f32.mrf.mxu0
        %v437 = vadd.f32 %v399, %v436
        %438 = vmatmul.f32.gmra.mxu0 %v356
        %v439 = vpop.f32.mrf.mxu0
        %v440 = vadd.f32 %v399, %v439
        %441 = vmatmul.f32.gmra.mxu0 %v357
        %v442 = vpop.f32.mrf.mxu0
        %v443 = vadd.f32 %v399, %v442
        %444 = vmatmul.f32.gmra.mxu0 %v358
        %v445 = vpop.f32.mrf.mxu0
        %v446 = vadd.f32 %v399, %v445
        %447 = vmatmul.f32.gmra.mxu0 %v359
        %v448 = vpop.f32.mrf.mxu0
        %v449 = vadd.f32 %v399, %v448
        %450 = vmatmul.f32.gmra.mxu0 %v360
        %v451 = vpop.f32.mrf.mxu0
        %v452 = vadd.f32 %v399, %v451
        %453 = vmatmul.f32.gmra.mxu0 %v361
        %v454 = vpop.f32.mrf.mxu0
        %v455 = vadd.f32 %v399, %v454
        %456 = vmatmul.f32.gmra.mxu0 %v362
        %v457 = vpop.f32.mrf.mxu0
        %v458 = vadd.f32 %v399, %v457
        %459 = vmatmul.f32.gmra.mxu0 %v363
        %v460 = vpop.f32.mrf.mxu0
        %v461 = vadd.f32 %v399, %v460
        %462 = vmatmul.f32.gmra.mxu0 %v364
        %v463 = vpop.f32.mrf.mxu0
        %v464 = vadd.f32 %v399, %v463
        %465 = vmatmul.f32.gmra.mxu0 %v365
        %v466 = vpop.f32.mrf.mxu0
        %v467 = vadd.f32 %v399, %v466
        %468 = vmatmul.f32.gmra.mxu0 %v366
        %v469 = vpop.f32.mrf.mxu0
        %v470 = vadd.f32 %v399, %v469
        %471 = vmatmul.f32.gmra.mxu0 %v367
        %v472 = vpop.f32.mrf.mxu0
        %v473 = vadd.f32 %v399, %v472
        %474 = vmatmul.f32.gmra.mxu0 %v368
        %v475 = vpop.f32.mrf.mxu0
        %v476 = vadd.f32 %v399, %v475
        %477 = vmatmul.f32.gmra.mxu0 %v369
        %v478 = vpop.f32.mrf.mxu0
        %v479 = vadd.f32 %v399, %v478
        %480 = vmatmul.f32.gmra.mxu0 %v370
        %v481 = vpop.f32.mrf.mxu0
        %v482 = vadd.f32 %v399, %v481
        %483 = vmatmul.f32.gmra.mxu0 %v371
        %v484 = vpop.f32.mrf.mxu0
        %v485 = vadd.f32 %v399, %v484
        %486 = vmatmul.f32.gmra.mxu0 %v372
        %v487 = vpop.f32.mrf.mxu0
        %v488 = vadd.f32 %v399, %v487
        %489 = vmatmul.f32.gmra.mxu0 %v373
        %v490 = vpop.f32.mrf.mxu0
        %v491 = vadd.f32 %v399, %v490
        %492 = vmatmul.f32.gmra.mxu0 %v374
        %v493 = vpop.f32.mrf.mxu0
        %v494 = vadd.f32 %v399, %v493
        %495 = vmatmul.f32.gmra.mxu0 %v375
        %v496 = vpop.f32.mrf.mxu0
        %v497 = vadd.f32 %v399, %v496
        %498 = vmatmul.f32.gmra.mxu0 %v376
        %v499 = vpop.f32.mrf.mxu0
        %v500 = vadd.f32 %v399, %v499
        %501 = vmatmul.f32.gmra.mxu0 %v377
        %v502 = vpop.f32.mrf.mxu0
        %v503 = vadd.f32 %v399, %v502
        %504 = vmatmul.f32.gmra.mxu0 %v378
        %v505 = vpop.f32.mrf.mxu0
        %v506 = vadd.f32 %v399, %v505
        %507 = vmatmul.f32.gmra.mxu0 %v379
        %v508 = vpop.f32.mrf.mxu0
        %v509 = vadd.f32 %v399, %v508
        %510 = vmatmul.f32.gmra.mxu0 %v380
        %v511 = vpop.f32.mrf.mxu0
        %v512 = vadd.f32 %v399, %v511
        %513 = vdwg.mxu0
        %v514 = vmax.f32 %v419, 0.0
        %v515 = vmax.f32 %v422, 0.0
        %v516 = vmax.f32 %v425, 0.0
        %v517 = vmax.f32 %v428, 0.0
        %v518 = vmax.f32 %v431, 0.0
        %v519 = vmax.f32 %v434, 0.0
        %v520 = vmax.f32 %v437, 0.0
        %v521 = vmax.f32 %v440, 0.0
        %v522 = vmax.f32 %v443, 0.0
        %v523 = vmax.f32 %v446, 0.0
        %v524 = vmax.f32 %v449, 0.0
        %v525 = vmax.f32 %v452, 0.0
        %v526 = vmax.f32 %v455, 0.0
        %v527 = vmax.f32 %v458, 0.0
        %v528 = vmax.f32 %v461, 0.0
        %v529 = vmax.f32 %v464, 0.0
        %v530 = vmax.f32 %v467, 0.0
        %v531 = vmax.f32 %v470, 0.0
        %v532 = vmax.f32 %v473, 0.0
        %v533 = vmax.f32 %v476, 0.0
        %v534 = vmax.f32 %v479, 0.0
        %v535 = vmax.f32 %v482, 0.0
        %v536 = vmax.f32 %v485, 0.0
        %v537 = vmax.f32 %v488, 0.0
        %v538 = vmax.f32 %v491, 0.0
        %v539 = vmax.f32 %v494, 0.0
        %v540 = vmax.f32 %v497, 0.0
        %v541 = vmax.f32 %v500, 0.0
        %v542 = vmax.f32 %v503, 0.0
        %v543 = vmax.f32 %v506, 0.0
        %v544 = vmax.f32 %v509, 0.0
        %v545 = vmax.f32 %v512, 0.0
        %546 = vst [vmem:[#allocation2] sm:$0xff] 0.0
        %547 = vst [vmem:[#allocation2 + $0x8] sm:$0xff] 0.0
        %548 = vst [vmem:[#allocation2 + $0x10] sm:$0x3] 0.0
        %s549 = scalar_lea.vmem [#allocation2], 408
        %550 = vst [vmem:[%s549] sm:$0xff] 0.0
        %551 = vst [vmem:[%s549 + $0x8] sm:$0xff] 0.0
        %552 = vst [vmem:[%s549 + $0x10] sm:$0x3] 0.0
        %s553 = scalar_lea.vmem [#allocation2], 24
        %554 = vst [vmem:[%s553 + $0x1] sm:$0xff] %v514
        %555 = vst [vmem:[%s553 + $0x9] sm:$0xff] %v515
        %556 = vst [vmem:[%s553 + $0x19] sm:$0xff] %v516
        %557 = vst [vmem:[%s553 + $0x21] sm:$0xff] %v517
        %558 = vst [vmem:[%s553 + $0x31] sm:$0xff] %v518
        %559 = vst [vmem:[%s553 + $0x39] sm:$0xff] %v519
        %560 = vst [vmem:[%s553 + $0x49] sm:$0xff] %v520
        %561 = vst [vmem:[%s553 + $0x51] sm:$0xff] %v521
        %562 = vst [vmem:[%s553 + $0x61] sm:$0xff] %v522
        %563 = vst [vmem:[%s553 + $0x69] sm:$0xff] %v523
        %564 = vst [vmem:[%s553 + $0x79] sm:$0xff] %v524
        %565 = vst [vmem:[%s553 + $0x81] sm:$0xff] %v525
        %566 = vst [vmem:[%s553 + $0x91] sm:$0xff] %v526
        %567 = vst [vmem:[%s553 + $0x99] sm:$0xff] %v527
        %568 = vst [vmem:[%s553 + $0xa9] sm:$0xff] %v528
        %569 = vst [vmem:[%s553 + $0xb1] sm:$0xff] %v529
        %570 = vst [vmem:[%s553 + $0xc1] sm:$0xff] %v530
        %571 = vst [vmem:[%s553 + $0xc9] sm:$0xff] %v531
        %572 = vst [vmem:[%s553 + $0xd9] sm:$0xff] %v532
        %573 = vst [vmem:[%s553 + $0xe1] sm:$0xff] %v533
        %574 = vst [vmem:[%s553 + $0xf1] sm:$0xff] %v534
        %575 = vst [vmem:[%s553 + $0xf9] sm:$0xff] %v535
        %576 = vst [vmem:[%s553 + $0x109] sm:$0xff] %v536
        %577 = vst [vmem:[%s553 + $0x111] sm:$0xff] %v537
        %578 = vst [vmem:[%s553 + $0x121] sm:$0xff] %v538
        %579 = vst [vmem:[%s553 + $0x129] sm:$0xff] %v539
        %580 = vst [vmem:[%s553 + $0x139] sm:$0xff] %v540
        %581 = vst [vmem:[%s553 + $0x141] sm:$0xff] %v541
        %582 = vst [vmem:[%s553 + $0x151] sm:$0xff] %v542
        %583 = vst [vmem:[%s553 + $0x159] sm:$0xff] %v543
        %584 = vst [vmem:[%s553 + $0x169] sm:$0xff] %v544
        %585 = vst [vmem:[%s553 + $0x171] sm:$0xff] %v545
        %v586 = vlaneseq
        %v587 = vshrl.u32 %v586, 7
        %v588 = vadd.s32 %v587, 8
        %v589 = vld [vmem:[%s4] sm:$0x1]
        %v591 = vperm.slane %v589, 0
        %v593 = vld [vmem:[#allocation2] sm:$0xff]
        %v594 = vld [vmem:[#allocation2 + $0x8] sm:$0xff]
        %v595 = vld [vmem:[#allocation2 + $0x18] sm:$0xff]
        %v596 = vld [vmem:[#allocation2 + $0x20] sm:$0xff]
        %v597 = vld [vmem:[#allocation2 + $0x30] sm:$0xff]
        %v598 = vld [vmem:[#allocation2 + $0x38] sm:$0xff]
        %v599 = vld [vmem:[#allocation2 + $0x48] sm:$0xff]
        %v600 = vld [vmem:[#allocation2 + $0x50] sm:$0xff]
        %v601 = vld [vmem:[#allocation2 + $0x60] sm:$0xff]
        %v602 = vld [vmem:[#allocation2 + $0x68] sm:$0xff]
        %v603 = vld [vmem:[#allocation2 + $0x78] sm:$0xff]
        %v604 = vld [vmem:[#allocation2 + $0x80] sm:$0xff]
        %v605 = vld [vmem:[#allocation2 + $0x90] sm:$0xff]
        %v606 = vld [vmem:[#allocation2 + $0x98] sm:$0xff]
        %v607 = vld [vmem:[#allocation2 + $0xa8] sm:$0xff]
        %v608 = vld [vmem:[#allocation2 + $0xb0] sm:$0xff]
        %v609 = vld [vmem:[#allocation2 + $0xc0] sm:$0xff]
        %v610 = vld [vmem:[#allocation2 + $0xc8] sm:$0xff]
        %v611 = vld [vmem:[#allocation2 + $0xd8] sm:$0xff]
        %v612 = vld [vmem:[#allocation2 + $0xe0] sm:$0xff]
        %v613 = vld [vmem:[#allocation2 + $0xf0] sm:$0xff]
        %v614 = vld [vmem:[#allocation2 + $0xf8] sm:$0xff]
        %v615 = vld [vmem:[#allocation2 + $0x108] sm:$0xff]
        %v616 = vld [vmem:[#allocation2 + $0x110] sm:$0xff]
        %v617 = vld [vmem:[#allocation2 + $0x120] sm:$0xff]
        %v618 = vld [vmem:[#allocation2 + $0x128] sm:$0xff]
        %v619 = vld [vmem:[#allocation2 + $0x138] sm:$0xff]
        %v620 = vld [vmem:[#allocation2 + $0x140] sm:$0xff]
        %v621 = vld [vmem:[#allocation2 + $0x150] sm:$0xff]
        %v622 = vld [vmem:[#allocation2 + $0x158] sm:$0xff]
        %v623 = vld [vmem:[#allocation2 + $0x168] sm:$0xff]
        %v624 = vld [vmem:[#allocation2 + $0x170] sm:$0xff]
        %v625 = vld [vmem:[#allocation2 + $0x180] sm:$0xff]
        %v626 = vld [vmem:[#allocation2 + $0x188] sm:$0xff]
        %v627 = vld [vmem:[#allocation2 + $0x198] sm:$0xff]
        %v628 = vld [vmem:[#allocation2 + $0x1a0] sm:$0xff]
        %vm629 = vcmp.ne.s32.totalorder %v587, 0
        %vm630 = vcmp.ne.s32.totalorder %v588, 0
        %v631 = vsel %vm629, 1, 0
        %v632 = vsel %vm630, 1, 0
        %vm633 = vcmp.eq.s32.totalorder %v631, 1
        %vm634 = vcmp.eq.s32.totalorder %v632, 1
        %v635 = vsel %vm633, %v593, 0.0
        %v636 = vsel %vm634, %v594, 0.0
        %v637 = vsel %vm633, %v595, 0.0
        %v638 = vsel %vm634, %v596, 0.0
        %v639 = vsel %vm633, %v597, 0.0
        %v640 = vsel %vm634, %v598, 0.0
        %v641 = vsel %vm633, %v599, 0.0
        %v642 = vsel %vm634, %v600, 0.0
        %v643 = vsel %vm633, %v601, 0.0
        %v644 = vsel %vm634, %v602, 0.0
        %v645 = vsel %vm633, %v603, 0.0
        %v646 = vsel %vm634, %v604, 0.0
        %v647 = vsel %vm633, %v605, 0.0
        %v648 = vsel %vm634, %v606, 0.0
        %v649 = vsel %vm633, %v607, 0.0
        %v650 = vsel %vm634, %v608, 0.0
        %v651 = vsel %vm633, %v609, 0.0
        %v652 = vsel %vm634, %v610, 0.0
        %v653 = vsel %vm633, %v611, 0.0
        %v654 = vsel %vm634, %v612, 0.0
        %v655 = vsel %vm633, %v613, 0.0
        %v656 = vsel %vm634, %v614, 0.0
        %v657 = vsel %vm633, %v615, 0.0
        %v658 = vsel %vm634, %v616, 0.0
        %v659 = vsel %vm633, %v617, 0.0
        %v660 = vsel %vm634, %v618, 0.0
        %v661 = vsel %vm633, %v619, 0.0
        %v662 = vsel %vm634, %v620, 0.0
        %v663 = vsel %vm633, %v621, 0.0
        %v664 = vsel %vm634, %v622, 0.0
        %v665 = vsel %vm633, %v623, 0.0
        %v666 = vsel %vm634, %v624, 0.0
        %v667 = vsel %vm633, %v625, 0.0
        %v668 = vsel %vm634, %v626, 0.0
        %v669 = vsel %vm633, %v627, 0.0
        %v670 = vsel %vm634, %v628, 0.0
        %v671 = vld [vmem:[#allocation8] sm:$0xff]
        %v672 = vld [vmem:[#allocation8 + $0x8] sm:$0xff]
        %v673 = vld [vmem:[#allocation8 + $0x10] sm:$0xff]
        %v674 = vld [vmem:[#allocation8 + $0x18] sm:$0xff]
        %v675 = vld [vmem:[#allocation8 + $0x20] sm:$0xff]
        %v676 = vld [vmem:[#allocation8 + $0x28] sm:$0xff]
        %v677 = vld [vmem:[#allocation8 + $0x30] sm:$0xff]
        %v678 = vld [vmem:[#allocation8 + $0x38] sm:$0xff]
        %v679 = vld [vmem:[#allocation8 + $0x40] sm:$0xff]
        %v680 = vld [vmem:[#allocation8 + $0x48] sm:$0xff]
        %v681 = vld [vmem:[#allocation8 + $0x50] sm:$0xff]
        %v682 = vld [vmem:[#allocation8 + $0x58] sm:$0xff]
        %v683 = vld [vmem:[#allocation8 + $0x60] sm:$0xff]
        %v684 = vld [vmem:[#allocation8 + $0x68] sm:$0xff]
        %v685 = vld [vmem:[#allocation8 + $0x70] sm:$0xff]
        %v686 = vld [vmem:[#allocation8 + $0x78] sm:$0xff]
        %687 = vmatpush.msra.mxu0 %v686
        %688 = vmatpush.msra.mxu0 %v685
        %689 = vmatpush.msra.mxu0 %v684
        %690 = vmatpush.msra.mxu0 %v683
        %691 = vmatpush.msra.mxu0 %v682
        %692 = vmatpush.msra.mxu0 %v681
        %693 = vmatpush.msra.mxu0 %v680
        %694 = vmatpush.msra.mxu0 %v679
        %695 = vmatpush.msra.mxu0 %v678
        %696 = vmatpush.msra.mxu0 %v677
        %697 = vmatpush.msra.mxu0 %v676
        %698 = vmatpush.msra.mxu0 %v675
        %699 = vmatpush.msra.mxu0 %v674
        %700 = vmatpush.msra.mxu0 %v673
        %701 = vmatpush.msra.mxu0 %v672
        %702 = vmatpush.msra.mxu0 %v671
        %703 = vmatmul.f32.gmra.mxu0 %v635
        %v704 = vpop.f32.mrf.mxu0
        %v705 = vadd.f32 0.0, %v704
        %706 = vmatmul.f32.gmra.mxu0 %v636
        %v707 = vpop.f32.mrf.mxu0
        %v708 = vadd.f32 0.0, %v707
        %709 = vmatmul.f32.gmra.mxu0 %v637
        %v710 = vpop.f32.mrf.mxu0
        %v711 = vadd.f32 0.0, %v710
        %712 = vmatmul.f32.gmra.mxu0 %v638
        %v713 = vpop.f32.mrf.mxu0
        %v714 = vadd.f32 0.0, %v713
        %715 = vmatmul.f32.gmra.mxu0 %v639
        %v716 = vpop.f32.mrf.mxu0
        %v717 = vadd.f32 0.0, %v716
        %718 = vmatmul.f32.gmra.mxu0 %v640
        %v719 = vpop.f32.mrf.mxu0
        %v720 = vadd.f32 0.0, %v719
        %721 = vmatmul.f32.gmra.mxu0 %v641
        %v722 = vpop.f32.mrf.mxu0
        %v723 = vadd.f32 0.0, %v722
        %724 = vmatmul.f32.gmra.mxu0 %v642
        %v725 = vpop.f32.mrf.mxu0
        %v726 = vadd.f32 0.0, %v725
        %727 = vmatmul.f32.gmra.mxu0 %v643
        %v728 = vpop.f32.mrf.mxu0
        %v729 = vadd.f32 0.0, %v728
        %730 = vmatmul.f32.gmra.mxu0 %v644
        %v731 = vpop.f32.mrf.mxu0
        %v732 = vadd.f32 0.0, %v731
        %733 = vmatmul.f32.gmra.mxu0 %v645
        %v734 = vpop.f32.mrf.mxu0
        %v735 = vadd.f32 0.0, %v734
        %736 = vmatmul.f32.gmra.mxu0 %v646
        %v737 = vpop.f32.mrf.mxu0
        %v738 = vadd.f32 0.0, %v737
        %739 = vmatmul.f32.gmra.mxu0 %v647
        %v740 = vpop.f32.mrf.mxu0
        %v741 = vadd.f32 0.0, %v740
        %742 = vmatmul.f32.gmra.mxu0 %v648
        %v743 = vpop.f32.mrf.mxu0
        %v744 = vadd.f32 0.0, %v743
        %745 = vmatmul.f32.gmra.mxu0 %v649
        %v746 = vpop.f32.mrf.mxu0
        %v747 = vadd.f32 0.0, %v746
        %748 = vmatmul.f32.gmra.mxu0 %v650
        %v749 = vpop.f32.mrf.mxu0
        %v750 = vadd.f32 0.0, %v749
        %751 = vmatmul.f32.gmra.mxu0 %v651
        %v752 = vpop.f32.mrf.mxu0
        %v753 = vadd.f32 0.0, %v752
        %754 = vmatmul.f32.gmra.mxu0 %v652
        %v755 = vpop.f32.mrf.mxu0
        %v756 = vadd.f32 0.0, %v755
        %757 = vmatmul.f32.gmra.mxu0 %v653
        %v758 = vpop.f32.mrf.mxu0
        %v759 = vadd.f32 0.0, %v758
        %760 = vmatmul.f32.gmra.mxu0 %v654
        %v761 = vpop.f32.mrf.mxu0
        %v762 = vadd.f32 0.0, %v761
        %763 = vmatmul.f32.gmra.mxu0 %v655
        %v764 = vpop.f32.mrf.mxu0
        %v765 = vadd.f32 0.0, %v764
        %766 = vmatmul.f32.gmra.mxu0 %v656
        %v767 = vpop.f32.mrf.mxu0
        %v768 = vadd.f32 0.0, %v767
        %769 = vmatmul.f32.gmra.mxu0 %v657
        %v770 = vpop.f32.mrf.mxu0
        %v771 = vadd.f32 0.0, %v770
        %772 = vmatmul.f32.gmra.mxu0 %v658
        %v773 = vpop.f32.mrf.mxu0
        %v774 = vadd.f32 0.0, %v773
        %775 = vmatmul.f32.gmra.mxu0 %v659
        %v776 = vpop.f32.mrf.mxu0
        %v777 = vadd.f32 0.0, %v776
        %778 = vmatmul.f32.gmra.mxu0 %v660
        %v779 = vpop.f32.mrf.mxu0
        %v780 = vadd.f32 0.0, %v779
        %781 = vmatmul.f32.gmra.mxu0 %v661
        %v782 = vpop.f32.mrf.mxu0
        %v783 = vadd.f32 0.0, %v782
        %784 = vmatmul.f32.gmra.mxu0 %v662
        %v785 = vpop.f32.mrf.mxu0
        %v786 = vadd.f32 0.0, %v785
        %787 = vmatmul.f32.gmra.mxu0 %v663
        %v788 = vpop.f32.mrf.mxu0
        %v789 = vadd.f32 0.0, %v788
        %790 = vmatmul.f32.gmra.mxu0 %v664
        %v791 = vpop.f32.mrf.mxu0
        %v792 = vadd.f32 0.0, %v791
        %793 = vmatmul.f32.gmra.mxu0 %v665
        %v794 = vpop.f32.mrf.mxu0
        %v795 = vadd.f32 0.0, %v794
        %796 = vmatmul.f32.gmra.mxu0 %v666
        %v797 = vpop.f32.mrf.mxu0
        %v798 = vadd.f32 0.0, %v797
        %799 = vdwg.mxu0
        %v800 = vadd.f32 %v591, %v705
        %v801 = vadd.f32 %v591, %v708
        %v802 = vadd.f32 %v591, %v711
        %v803 = vadd.f32 %v591, %v714
        %v804 = vadd.f32 %v591, %v717
        %v805 = vadd.f32 %v591, %v720
        %v806 = vadd.f32 %v591, %v723
        %v807 = vadd.f32 %v591, %v726
        %v808 = vadd.f32 %v591, %v729
        %v809 = vadd.f32 %v591, %v732
        %v810 = vadd.f32 %v591, %v735
        %v811 = vadd.f32 %v591, %v738
        %v812 = vadd.f32 %v591, %v741
        %v813 = vadd.f32 %v591, %v744
        %v814 = vadd.f32 %v591, %v747
        %v815 = vadd.f32 %v591, %v750
        %v816 = vadd.f32 %v591, %v753
        %v817 = vadd.f32 %v591, %v756
        %v818 = vadd.f32 %v591, %v759
        %v819 = vadd.f32 %v591, %v762
        %v820 = vadd.f32 %v591, %v765
        %v821 = vadd.f32 %v591, %v768
        %v822 = vadd.f32 %v591, %v771
        %v823 = vadd.f32 %v591, %v774
        %v824 = vadd.f32 %v591, %v777
        %v825 = vadd.f32 %v591, %v780
        %v826 = vadd.f32 %v591, %v783
        %v827 = vadd.f32 %v591, %v786
        %v828 = vadd.f32 %v591, %v789
        %v829 = vadd.f32 %v591, %v792
        %v830 = vadd.f32 %v591, %v795
        %v831 = vadd.f32 %v591, %v798
        %s832 = scalar_lea.vmem [#allocation8], 384
        %v833 = vld [vmem:[%s832] sm:$0xff]
        %v834 = vld [vmem:[%s832 + $0x8] sm:$0xff]
        %v835 = vld [vmem:[%s832 + $0x10] sm:$0xff]
        %v836 = vld [vmem:[%s832 + $0x18] sm:$0xff]
        %v837 = vld [vmem:[%s832 + $0x20] sm:$0xff]
        %v838 = vld [vmem:[%s832 + $0x28] sm:$0xff]
        %v839 = vld [vmem:[%s832 + $0x30] sm:$0xff]
        %v840 = vld [vmem:[%s832 + $0x38] sm:$0xff]
        %v841 = vld [vmem:[%s832 + $0x40] sm:$0xff]
        %v842 = vld [vmem:[%s832 + $0x48] sm:$0xff]
        %v843 = vld [vmem:[%s832 + $0x50] sm:$0xff]
        %v844 = vld [vmem:[%s832 + $0x58] sm:$0xff]
        %v845 = vld [vmem:[%s832 + $0x60] sm:$0xff]
        %v846 = vld [vmem:[%s832 + $0x68] sm:$0xff]
        %v847 = vld [vmem:[%s832 + $0x70] sm:$0xff]
        %v848 = vld [vmem:[%s832 + $0x78] sm:$0xff]
        %849 = vmatpush.msra.mxu0 %v848
        %850 = vmatpush.msra.mxu0 %v847
        %851 = vmatpush.msra.mxu0 %v846
        %852 = vmatpush.msra.mxu0 %v845
        %853 = vmatpush.msra.mxu0 %v844
        %854 = vmatpush.msra.mxu0 %v843
        %855 = vmatpush.msra.mxu0 %v842
        %856 = vmatpush.msra.mxu0 %v841
        %857 = vmatpush.msra.mxu0 %v840
        %858 = vmatpush.msra.mxu0 %v839
        %859 = vmatpush.msra.mxu0 %v838
        %860 = vmatpush.msra.mxu0 %v837
        %861 = vmatpush.msra.mxu0 %v836
        %862 = vmatpush.msra.mxu0 %v835
        %863 = vmatpush.msra.mxu0 %v834
        %864 = vmatpush.msra.mxu0 %v833
        %865 = vmatmul.f32.gmra.mxu0 %v637
        %v866 = vpop.f32.mrf.mxu0
        %v867 = vadd.f32 0.0, %v866
        %868 = vmatmul.f32.gmra.mxu0 %v638
        %v869 = vpop.f32.mrf.mxu0
        %v870 = vadd.f32 0.0, %v869
        %871 = vmatmul.f32.gmra.mxu0 %v639
        %v872 = vpop.f32.mrf.mxu0
        %v873 = vadd.f32 0.0, %v872
        %874 = vmatmul.f32.gmra.mxu0 %v640
        %v875 = vpop.f32.mrf.mxu0
        %v876 = vadd.f32 0.0, %v875
        %877 = vmatmul.f32.gmra.mxu0 %v641
        %v878 = vpop.f32.mrf.mxu0
        %v879 = vadd.f32 0.0, %v878
        %880 = vmatmul.f32.gmra.mxu0 %v642
        %v881 = vpop.f32.mrf.mxu0
        %v882 = vadd.f32 0.0, %v881
        %883 = vmatmul.f32.gmra.mxu0 %v643
        %v884 = vpop.f32.mrf.mxu0
        %v885 = vadd.f32 0.0, %v884
        %886 = vmatmul.f32.gmra.mxu0 %v644
        %v887 = vpop.f32.mrf.mxu0
        %v888 = vadd.f32 0.0, %v887
        %889 = vmatmul.f32.gmra.mxu0 %v645
        %v890 = vpop.f32.mrf.mxu0
        %v891 = vadd.f32 0.0, %v890
        %892 = vmatmul.f32.gmra.mxu0 %v646
        %v893 = vpop.f32.mrf.mxu0
        %v894 = vadd.f32 0.0, %v893
        %895 = vmatmul.f32.gmra.mxu0 %v647
        %v896 = vpop.f32.mrf.mxu0
        %v897 = vadd.f32 0.0, %v896
        %898 = vmatmul.f32.gmra.mxu0 %v648
        %v899 = vpop.f32.mrf.mxu0
        %v900 = vadd.f32 0.0, %v899
        %901 = vmatmul.f32.gmra.mxu0 %v649
        %v902 = vpop.f32.mrf.mxu0
        %v903 = vadd.f32 0.0, %v902
        %904 = vmatmul.f32.gmra.mxu0 %v650
        %v905 = vpop.f32.mrf.mxu0
        %v906 = vadd.f32 0.0, %v905
        %907 = vmatmul.f32.gmra.mxu0 %v651
        %v908 = vpop.f32.mrf.mxu0
        %v909 = vadd.f32 0.0, %v908
        %910 = vmatmul.f32.gmra.mxu0 %v652
        %v911 = vpop.f32.mrf.mxu0
        %v912 = vadd.f32 0.0, %v911
        %913 = vmatmul.f32.gmra.mxu0 %v653
        %v914 = vpop.f32.mrf.mxu0
        %v915 = vadd.f32 0.0, %v914
        %916 = vmatmul.f32.gmra.mxu0 %v654
        %v917 = vpop.f32.mrf.mxu0
        %v918 = vadd.f32 0.0, %v917
        %919 = vmatmul.f32.gmra.mxu0 %v655
        %v920 = vpop.f32.mrf.mxu0
        %v921 = vadd.f32 0.0, %v920
        %922 = vmatmul.f32.gmra.mxu0 %v656
        %v923 = vpop.f32.mrf.mxu0
        %v924 = vadd.f32 0.0, %v923
        %925 = vmatmul.f32.gmra.mxu0 %v657
        %v926 = vpop.f32.mrf.mxu0
        %v927 = vadd.f32 0.0, %v926
        %928 = vmatmul.f32.gmra.mxu0 %v658
        %v929 = vpop.f32.mrf.mxu0
        %v930 = vadd.f32 0.0, %v929
        %931 = vmatmul.f32.gmra.mxu0 %v659
        %v932 = vpop.f32.mrf.mxu0
        %v933 = vadd.f32 0.0, %v932
        %934 = vmatmul.f32.gmra.mxu0 %v660
        %v935 = vpop.f32.mrf.mxu0
        %v936 = vadd.f32 0.0, %v935
        %937 = vmatmul.f32.gmra.mxu0 %v661
        %v938 = vpop.f32.mrf.mxu0
        %v939 = vadd.f32 0.0, %v938
        %940 = vmatmul.f32.gmra.mxu0 %v662
        %v941 = vpop.f32.mrf.mxu0
        %v942 = vadd.f32 0.0, %v941
        %943 = vmatmul.f32.gmra.mxu0 %v663
        %v944 = vpop.f32.mrf.mxu0
        %v945 = vadd.f32 0.0, %v944
        %946 = vmatmul.f32.gmra.mxu0 %v664
        %v947 = vpop.f32.mrf.mxu0
        %v948 = vadd.f32 0.0, %v947
        %949 = vmatmul.f32.gmra.mxu0 %v665
        %v950 = vpop.f32.mrf.mxu0
        %v951 = vadd.f32 0.0, %v950
        %952 = vmatmul.f32.gmra.mxu0 %v666
        %v953 = vpop.f32.mrf.mxu0
        %v954 = vadd.f32 0.0, %v953
        %955 = vmatmul.f32.gmra.mxu0 %v667
        %v956 = vpop.f32.mrf.mxu0
        %v957 = vadd.f32 0.0, %v956
        %958 = vmatmul.f32.gmra.mxu0 %v668
        %v959 = vpop.f32.mrf.mxu0
        %v960 = vadd.f32 0.0, %v959
        %961 = vdwg.mxu0
        %v962 = vadd.f32 %v800, %v867
        %v963 = vadd.f32 %v801, %v870
        %v964 = vadd.f32 %v802, %v873
        %v965 = vadd.f32 %v803, %v876
        %v966 = vadd.f32 %v804, %v879
        %v967 = vadd.f32 %v805, %v882
        %v968 = vadd.f32 %v806, %v885
        %v969 = vadd.f32 %v807, %v888
        %v970 = vadd.f32 %v808, %v891
        %v971 = vadd.f32 %v809, %v894
        %v972 = vadd.f32 %v810, %v897
        %v973 = vadd.f32 %v811, %v900
        %v974 = vadd.f32 %v812, %v903
        %v975 = vadd.f32 %v813, %v906
        %v976 = vadd.f32 %v814, %v909
        %v977 = vadd.f32 %v815, %v912
        %v978 = vadd.f32 %v816, %v915
        %v979 = vadd.f32 %v817, %v918
        %v980 = vadd.f32 %v818, %v921
        %v981 = vadd.f32 %v819, %v924
        %v982 = vadd.f32 %v820, %v927
        %v983 = vadd.f32 %v821, %v930
        %v984 = vadd.f32 %v822, %v933
        %v985 = vadd.f32 %v823, %v936
        %v986 = vadd.f32 %v824, %v939
        %v987 = vadd.f32 %v825, %v942
        %v988 = vadd.f32 %v826, %v945
        %v989 = vadd.f32 %v827, %v948
        %v990 = vadd.f32 %v828, %v951
        %v991 = vadd.f32 %v829, %v954
        %v992 = vadd.f32 %v830, %v957
        %v993 = vadd.f32 %v831, %v960
        %s994 = scalar_lea.vmem [#allocation8], 768
        %v995 = vld [vmem:[%s994] sm:$0xff]
        %v996 = vld [vmem:[%s994 + $0x8] sm:$0xff]
        %v997 = vld [vmem:[%s994 + $0x10] sm:$0xff]
        %v998 = vld [vmem:[%s994 + $0x18] sm:$0xff]
        %v999 = vld [vmem:[%s994 + $0x20] sm:$0xff]
        %v1000 = vld [vmem:[%s994 + $0x28] sm:$0xff]
        %v1001 = vld [vmem:[%s994 + $0x30] sm:$0xff]
        %v1002 = vld [vmem:[%s994 + $0x38] sm:$0xff]
        %v1003 = vld [vmem:[%s994 + $0x40] sm:$0xff]
        %v1004 = vld [vmem:[%s994 + $0x48] sm:$0xff]
        %v1005 = vld [vmem:[%s994 + $0x50] sm:$0xff]
        %v1006 = vld [vmem:[%s994 + $0x58] sm:$0xff]
        %v1007 = vld [vmem:[%s994 + $0x60] sm:$0xff]
        %v1008 = vld [vmem:[%s994 + $0x68] sm:$0xff]
        %v1009 = vld [vmem:[%s994 + $0x70] sm:$0xff]
        %v1010 = vld [vmem:[%s994 + $0x78] sm:$0xff]
        %1011 = vmatpush.msra.mxu0 %v1010
        %1012 = vmatpush.msra.mxu0 %v1009
        %1013 = vmatpush.msra.mxu0 %v1008
        %1014 = vmatpush.msra.mxu0 %v1007
        %1015 = vmatpush.msra.mxu0 %v1006
        %1016 = vmatpush.msra.mxu0 %v1005
        %1017 = vmatpush.msra.mxu0 %v1004
        %1018 = vmatpush.msra.mxu0 %v1003
        %1019 = vmatpush.msra.mxu0 %v1002
        %1020 = vmatpush.msra.mxu0 %v1001
        %1021 = vmatpush.msra.mxu0 %v1000
        %1022 = vmatpush.msra.mxu0 %v999
        %1023 = vmatpush.msra.mxu0 %v998
        %1024 = vmatpush.msra.mxu0 %v997
        %1025 = vmatpush.msra.mxu0 %v996
        %1026 = vmatpush.msra.mxu0 %v995
        %1027 = vmatmul.f32.gmra.mxu0 %v639
        %v1028 = vpop.f32.mrf.mxu0
        %v1029 = vadd.f32 0.0, %v1028
        %1030 = vmatmul.f32.gmra.mxu0 %v640
        %v1031 = vpop.f32.mrf.mxu0
        %v1032 = vadd.f32 0.0, %v1031
        %1033 = vmatmul.f32.gmra.mxu0 %v641
        %v1034 = vpop.f32.mrf.mxu0
        %v1035 = vadd.f32 0.0, %v1034
        %1036 = vmatmul.f32.gmra.mxu0 %v642
        %v1037 = vpop.f32.mrf.mxu0
        %v1038 = vadd.f32 0.0, %v1037
        %1039 = vmatmul.f32.gmra.mxu0 %v643
        %v1040 = vpop.f32.mrf.mxu0
        %v1041 = vadd.f32 0.0, %v1040
        %1042 = vmatmul.f32.gmra.mxu0 %v644
        %v1043 = vpop.f32.mrf.mxu0
        %v1044 = vadd.f32 0.0, %v1043
        %1045 = vmatmul.f32.gmra.mxu0 %v645
        %v1046 = vpop.f32.mrf.mxu0
        %v1047 = vadd.f32 0.0, %v1046
        %1048 = vmatmul.f32.gmra.mxu0 %v646
        %v1049 = vpop.f32.mrf.mxu0
        %v1050 = vadd.f32 0.0, %v1049
        %1051 = vmatmul.f32.gmra.mxu0 %v647
        %v1052 = vpop.f32.mrf.mxu0
        %v1053 = vadd.f32 0.0, %v1052
        %1054 = vmatmul.f32.gmra.mxu0 %v648
        %v1055 = vpop.f32.mrf.mxu0
        %v1056 = vadd.f32 0.0, %v1055
        %1057 = vmatmul.f32.gmra.mxu0 %v649
        %v1058 = vpop.f32.mrf.mxu0
        %v1059 = vadd.f32 0.0, %v1058
        %1060 = vmatmul.f32.gmra.mxu0 %v650
        %v1061 = vpop.f32.mrf.mxu0
        %v1062 = vadd.f32 0.0, %v1061
        %1063 = vmatmul.f32.gmra.mxu0 %v651
        %v1064 = vpop.f32.mrf.mxu0
        %v1065 = vadd.f32 0.0, %v1064
        %1066 = vmatmul.f32.gmra.mxu0 %v652
        %v1067 = vpop.f32.mrf.mxu0
        %v1068 = vadd.f32 0.0, %v1067
        %1069 = vmatmul.f32.gmra.mxu0 %v653
        %v1070 = vpop.f32.mrf.mxu0
        %v1071 = vadd.f32 0.0, %v1070
        %1072 = vmatmul.f32.gmra.mxu0 %v654
        %v1073 = vpop.f32.mrf.mxu0
        %v1074 = vadd.f32 0.0, %v1073
        %1075 = vmatmul.f32.gmra.mxu0 %v655
        %v1076 = vpop.f32.mrf.mxu0
        %v1077 = vadd.f32 0.0, %v1076
        %1078 = vmatmul.f32.gmra.mxu0 %v656
        %v1079 = vpop.f32.mrf.mxu0
        %v1080 = vadd.f32 0.0, %v1079
        %1081 = vmatmul.f32.gmra.mxu0 %v657
        %v1082 = vpop.f32.mrf.mxu0
        %v1083 = vadd.f32 0.0, %v1082
        %1084 = vmatmul.f32.gmra.mxu0 %v658
        %v1085 = vpop.f32.mrf.mxu0
        %v1086 = vadd.f32 0.0, %v1085
        %1087 = vmatmul.f32.gmra.mxu0 %v659
        %v1088 = vpop.f32.mrf.mxu0
        %v1089 = vadd.f32 0.0, %v1088
        %1090 = vmatmul.f32.gmra.mxu0 %v660
        %v1091 = vpop.f32.mrf.mxu0
        %v1092 = vadd.f32 0.0, %v1091
        %1093 = vmatmul.f32.gmra.mxu0 %v661
        %v1094 = vpop.f32.mrf.mxu0
        %v1095 = vadd.f32 0.0, %v1094
        %1096 = vmatmul.f32.gmra.mxu0 %v662
        %v1097 = vpop.f32.mrf.mxu0
        %v1098 = vadd.f32 0.0, %v1097
        %1099 = vmatmul.f32.gmra.mxu0 %v663
        %v1100 = vpop.f32.mrf.mxu0
        %v1101 = vadd.f32 0.0, %v1100
        %1102 = vmatmul.f32.gmra.mxu0 %v664
        %v1103 = vpop.f32.mrf.mxu0
        %v1104 = vadd.f32 0.0, %v1103
        %1105 = vmatmul.f32.gmra.mxu0 %v665
        %v1106 = vpop.f32.mrf.mxu0
        %v1107 = vadd.f32 0.0, %v1106
        %1108 = vmatmul.f32.gmra.mxu0 %v666
        %v1109 = vpop.f32.mrf.mxu0
        %v1110 = vadd.f32 0.0, %v1109
        %1111 = vmatmul.f32.gmra.mxu0 %v667
        %v1112 = vpop.f32.mrf.mxu0
        %v1113 = vadd.f32 0.0, %v1112
        %1114 = vmatmul.f32.gmra.mxu0 %v668
        %v1115 = vpop.f32.mrf.mxu0
        %v1116 = vadd.f32 0.0, %v1115
        %1117 = vmatmul.f32.gmra.mxu0 %v669
        %v1118 = vpop.f32.mrf.mxu0
        %v1119 = vadd.f32 0.0, %v1118
        %1120 = vmatmul.f32.gmra.mxu0 %v670
        %v1121 = vpop.f32.mrf.mxu0
        %v1122 = vadd.f32 0.0, %v1121
        %1123 = vdwg.mxu0
        %v1124 = vadd.f32 %v962, %v1029
        %v1125 = vadd.f32 %v963, %v1032
        %v1126 = vadd.f32 %v964, %v1035
        %v1127 = vadd.f32 %v965, %v1038
        %v1128 = vadd.f32 %v966, %v1041
        %v1129 = vadd.f32 %v967, %v1044
        %v1130 = vadd.f32 %v968, %v1047
        %v1131 = vadd.f32 %v969, %v1050
        %v1132 = vadd.f32 %v970, %v1053
        %v1133 = vadd.f32 %v971, %v1056
        %v1134 = vadd.f32 %v972, %v1059
        %v1135 = vadd.f32 %v973, %v1062
        %v1136 = vadd.f32 %v974, %v1065
        %v1137 = vadd.f32 %v975, %v1068
        %v1138 = vadd.f32 %v976, %v1071
        %v1139 = vadd.f32 %v977, %v1074
        %v1140 = vadd.f32 %v978, %v1077
        %v1141 = vadd.f32 %v979, %v1080
        %v1142 = vadd.f32 %v980, %v1083
        %v1143 = vadd.f32 %v981, %v1086
        %v1144 = vadd.f32 %v982, %v1089
        %v1145 = vadd.f32 %v983, %v1092
        %v1146 = vadd.f32 %v984, %v1095
        %v1147 = vadd.f32 %v985, %v1098
        %v1148 = vadd.f32 %v986, %v1101
        %v1149 = vadd.f32 %v987, %v1104
        %v1150 = vadd.f32 %v988, %v1107
        %v1151 = vadd.f32 %v989, %v1110
        %v1152 = vadd.f32 %v990, %v1113
        %v1153 = vadd.f32 %v991, %v1116
        %v1154 = vadd.f32 %v992, %v1119
        %v1155 = vadd.f32 %v993, %v1122
        %v1156 = vld [vmem:[#allocation2 + $0x1] sm:$0xff]
        %v1157 = vld [vmem:[#allocation2 + $0x9] sm:$0xff]
        %v1158 = vld [vmem:[#allocation2 + $0x19] sm:$0xff]
        %v1159 = vld [vmem:[#allocation2 + $0x21] sm:$0xff]
        %v1160 = vld [vmem:[#allocation2 + $0x31] sm:$0xff]
        %v1161 = vld [vmem:[#allocation2 + $0x39] sm:$0xff]
        %v1162 = vld [vmem:[#allocation2 + $0x49] sm:$0xff]
        %v1163 = vld [vmem:[#allocation2 + $0x51] sm:$0xff]
        %v1164 = vld [vmem:[#allocation2 + $0x61] sm:$0xff]
        %v1165 = vld [vmem:[#allocation2 + $0x69] sm:$0xff]
        %v1166 = vld [vmem:[#allocation2 + $0x79] sm:$0xff]
        %v1167 = vld [vmem:[#allocation2 + $0x81] sm:$0xff]
        %v1168 = vld [vmem:[#allocation2 + $0x91] sm:$0xff]
        %v1169 = vld [vmem:[#allocation2 + $0x99] sm:$0xff]
        %v1170 = vld [vmem:[#allocation2 + $0xa9] sm:$0xff]
        %v1171 = vld [vmem:[#allocation2 + $0xb1] sm:$0xff]
        %v1172 = vld [vmem:[#allocation2 + $0xc1] sm:$0xff]
        %v1173 = vld [vmem:[#allocation2 + $0xc9] sm:$0xff]
        %v1174 = vld [vmem:[#allocation2 + $0xd9] sm:$0xff]
        %v1175 = vld [vmem:[#allocation2 + $0xe1] sm:$0xff]
        %v1176 = vld [vmem:[#allocation2 + $0xf1] sm:$0xff]
        %v1177 = vld [vmem:[#allocation2 + $0xf9] sm:$0xff]
        %v1178 = vld [vmem:[#allocation2 + $0x109] sm:$0xff]
        %v1179 = vld [vmem:[#allocation2 + $0x111] sm:$0xff]
        %v1180 = vld [vmem:[#allocation2 + $0x121] sm:$0xff]
        %v1181 = vld [vmem:[#allocation2 + $0x129] sm:$0xff]
        %v1182 = vld [vmem:[#allocation2 + $0x139] sm:$0xff]
        %v1183 = vld [vmem:[#allocation2 + $0x141] sm:$0xff]
        %v1184 = vld [vmem:[#allocation2 + $0x151] sm:$0xff]
        %v1185 = vld [vmem:[#allocation2 + $0x159] sm:$0xff]
        %v1186 = vld [vmem:[#allocation2 + $0x169] sm:$0xff]
        %v1187 = vld [vmem:[#allocation2 + $0x171] sm:$0xff]
        %v1188 = vld [vmem:[#allocation2 + $0x181] sm:$0xff]
        %v1189 = vld [vmem:[#allocation2 + $0x189] sm:$0xff]
        %v1190 = vld [vmem:[#allocation2 + $0x199] sm:$0xff]
        %v1191 = vld [vmem:[#allocation2 + $0x1a1] sm:$0xff]
        %s1192 = scalar_lea.vmem [#allocation8], 128
        %v1193 = vld [vmem:[%s1192] sm:$0xff]
        %v1194 = vld [vmem:[%s1192 + $0x8] sm:$0xff]
        %v1195 = vld [vmem:[%s1192 + $0x10] sm:$0xff]
        %v1196 = vld [vmem:[%s1192 + $0x18] sm:$0xff]
        %v1197 = vld [vmem:[%s1192 + $0x20] sm:$0xff]
        %v1198 = vld [vmem:[%s1192 + $0x28] sm:$0xff]
        %v1199 = vld [vmem:[%s1192 + $0x30] sm:$0xff]
        %v1200 = vld [vmem:[%s1192 + $0x38] sm:$0xff]
        %v1201 = vld [vmem:[%s1192 + $0x40] sm:$0xff]
        %v1202 = vld [vmem:[%s1192 + $0x48] sm:$0xff]
        %v1203 = vld [vmem:[%s1192 + $0x50] sm:$0xff]
        %v1204 = vld [vmem:[%s1192 + $0x58] sm:$0xff]
        %v1205 = vld [vmem:[%s1192 + $0x60] sm:$0xff]
        %v1206 = vld [vmem:[%s1192 + $0x68] sm:$0xff]
        %v1207 = vld [vmem:[%s1192 + $0x70] sm:$0xff]
        %v1208 = vld [vmem:[%s1192 + $0x78] sm:$0xff]
        %1209 = vmatpush.msra.mxu0 %v1208
        %1210 = vmatpush.msra.mxu0 %v1207
        %1211 = vmatpush.msra.mxu0 %v1206
        %1212 = vmatpush.msra.mxu0 %v1205
        %1213 = vmatpush.msra.mxu0 %v1204
        %1214 = vmatpush.msra.mxu0 %v1203
        %1215 = vmatpush.msra.mxu0 %v1202
        %1216 = vmatpush.msra.mxu0 %v1201
        %1217 = vmatpush.msra.mxu0 %v1200
        %1218 = vmatpush.msra.mxu0 %v1199
        %1219 = vmatpush.msra.mxu0 %v1198
        %1220 = vmatpush.msra.mxu0 %v1197
        %1221 = vmatpush.msra.mxu0 %v1196
        %1222 = vmatpush.msra.mxu0 %v1195
        %1223 = vmatpush.msra.mxu0 %v1194
        %1224 = vmatpush.msra.mxu0 %v1193
        %1225 = vmatmul.f32.gmra.mxu0 %v1156
        %v1226 = vpop.f32.mrf.mxu0
        %v1227 = vadd.f32 0.0, %v1226
        %1228 = vmatmul.f32.gmra.mxu0 %v1157
        %v1229 = vpop.f32.mrf.mxu0
        %v1230 = vadd.f32 0.0, %v1229
        %1231 = vmatmul.f32.gmra.mxu0 %v1158
        %v1232 = vpop.f32.mrf.mxu0
        %v1233 = vadd.f32 0.0, %v1232
        %1234 = vmatmul.f32.gmra.mxu0 %v1159
        %v1235 = vpop.f32.mrf.mxu0
        %v1236 = vadd.f32 0.0, %v1235
        %1237 = vmatmul.f32.gmra.mxu0 %v1160
        %v1238 = vpop.f32.mrf.mxu0
        %v1239 = vadd.f32 0.0, %v1238
        %1240 = vmatmul.f32.gmra.mxu0 %v1161
        %v1241 = vpop.f32.mrf.mxu0
        %v1242 = vadd.f32 0.0, %v1241
        %1243 = vmatmul.f32.gmra.mxu0 %v1162
        %v1244 = vpop.f32.mrf.mxu0
        %v1245 = vadd.f32 0.0, %v1244
        %1246 = vmatmul.f32.gmra.mxu0 %v1163
        %v1247 = vpop.f32.mrf.mxu0
        %v1248 = vadd.f32 0.0, %v1247
        %1249 = vmatmul.f32.gmra.mxu0 %v1164
        %v1250 = vpop.f32.mrf.mxu0
        %v1251 = vadd.f32 0.0, %v1250
        %1252 = vmatmul.f32.gmra.mxu0 %v1165
        %v1253 = vpop.f32.mrf.mxu0
        %v1254 = vadd.f32 0.0, %v1253
        %1255 = vmatmul.f32.gmra.mxu0 %v1166
        %v1256 = vpop.f32.mrf.mxu0
        %v1257 = vadd.f32 0.0, %v1256
        %1258 = vmatmul.f32.gmra.mxu0 %v1167
        %v1259 = vpop.f32.mrf.mxu0
        %v1260 = vadd.f32 0.0, %v1259
        %1261 = vmatmul.f32.gmra.mxu0 %v1168
        %v1262 = vpop.f32.mrf.mxu0
        %v1263 = vadd.f32 0.0, %v1262
        %1264 = vmatmul.f32.gmra.mxu0 %v1169
        %v1265 = vpop.f32.mrf.mxu0
        %v1266 = vadd.f32 0.0, %v1265
        %1267 = vmatmul.f32.gmra.mxu0 %v1170
        %v1268 = vpop.f32.mrf.mxu0
        %v1269 = vadd.f32 0.0, %v1268
        %1270 = vmatmul.f32.gmra.mxu0 %v1171
        %v1271 = vpop.f32.mrf.mxu0
        %v1272 = vadd.f32 0.0, %v1271
        %1273 = vmatmul.f32.gmra.mxu0 %v1172
        %v1274 = vpop.f32.mrf.mxu0
        %v1275 = vadd.f32 0.0, %v1274
        %1276 = vmatmul.f32.gmra.mxu0 %v1173
        %v1277 = vpop.f32.mrf.mxu0
        %v1278 = vadd.f32 0.0, %v1277
        %1279 = vmatmul.f32.gmra.mxu0 %v1174
        %v1280 = vpop.f32.mrf.mxu0
        %v1281 = vadd.f32 0.0, %v1280
        %1282 = vmatmul.f32.gmra.mxu0 %v1175
        %v1283 = vpop.f32.mrf.mxu0
        %v1284 = vadd.f32 0.0, %v1283
        %1285 = vmatmul.f32.gmra.mxu0 %v1176
        %v1286 = vpop.f32.mrf.mxu0
        %v1287 = vadd.f32 0.0, %v1286
        %1288 = vmatmul.f32.gmra.mxu0 %v1177
        %v1289 = vpop.f32.mrf.mxu0
        %v1290 = vadd.f32 0.0, %v1289
        %1291 = vmatmul.f32.gmra.mxu0 %v1178
        %v1292 = vpop.f32.mrf.mxu0
        %v1293 = vadd.f32 0.0, %v1292
        %1294 = vmatmul.f32.gmra.mxu0 %v1179
        %v1295 = vpop.f32.mrf.mxu0
        %v1296 = vadd.f32 0.0, %v1295
        %1297 = vmatmul.f32.gmra.mxu0 %v1180
        %v1298 = vpop.f32.mrf.mxu0
        %v1299 = vadd.f32 0.0, %v1298
        %1300 = vmatmul.f32.gmra.mxu0 %v1181
        %v1301 = vpop.f32.mrf.mxu0
        %v1302 = vadd.f32 0.0, %v1301
        %1303 = vmatmul.f32.gmra.mxu0 %v1182
        %v1304 = vpop.f32.mrf.mxu0
        %v1305 = vadd.f32 0.0, %v1304
        %1306 = vmatmul.f32.gmra.mxu0 %v1183
        %v1307 = vpop.f32.mrf.mxu0
        %v1308 = vadd.f32 0.0, %v1307
        %1309 = vmatmul.f32.gmra.mxu0 %v1184
        %v1310 = vpop.f32.mrf.mxu0
        %v1311 = vadd.f32 0.0, %v1310
        %1312 = vmatmul.f32.gmra.mxu0 %v1185
        %v1313 = vpop.f32.mrf.mxu0
        %v1314 = vadd.f32 0.0, %v1313
        %1315 = vmatmul.f32.gmra.mxu0 %v1186
        %v1316 = vpop.f32.mrf.mxu0
        %v1317 = vadd.f32 0.0, %v1316
        %1318 = vmatmul.f32.gmra.mxu0 %v1187
        %v1319 = vpop.f32.mrf.mxu0
        %v1320 = vadd.f32 0.0, %v1319
        %1321 = vdwg.mxu0
        %v1322 = vadd.f32 %v1124, %v1227
        %v1323 = vadd.f32 %v1125, %v1230
        %v1324 = vadd.f32 %v1126, %v1233
        %v1325 = vadd.f32 %v1127, %v1236
        %v1326 = vadd.f32 %v1128, %v1239
        %v1327 = vadd.f32 %v1129, %v1242
        %v1328 = vadd.f32 %v1130, %v1245
        %v1329 = vadd.f32 %v1131, %v1248
        %v1330 = vadd.f32 %v1132, %v1251
        %v1331 = vadd.f32 %v1133, %v1254
        %v1332 = vadd.f32 %v1134, %v1257
        %v1333 = vadd.f32 %v1135, %v1260
        %v1334 = vadd.f32 %v1136, %v1263
        %v1335 = vadd.f32 %v1137, %v1266
        %v1336 = vadd.f32 %v1138, %v1269
        %v1337 = vadd.f32 %v1139, %v1272
        %v1338 = vadd.f32 %v1140, %v1275
        %v1339 = vadd.f32 %v1141, %v1278
        %v1340 = vadd.f32 %v1142, %v1281
        %v1341 = vadd.f32 %v1143, %v1284
        %v1342 = vadd.f32 %v1144, %v1287
        %v1343 = vadd.f32 %v1145, %v1290
        %v1344 = vadd.f32 %v1146, %v1293
        %v1345 = vadd.f32 %v1147, %v1296
        %v1346 = vadd.f32 %v1148, %v1299
        %v1347 = vadd.f32 %v1149, %v1302
        %v1348 = vadd.f32 %v1150, %v1305
        %v1349 = vadd.f32 %v1151, %v1308
        %v1350 = vadd.f32 %v1152, %v1311
        %v1351 = vadd.f32 %v1153, %v1314
        %v1352 = vadd.f32 %v1154, %v1317
        %v1353 = vadd.f32 %v1155, %v1320
        %s1354 = scalar_lea.vmem [#allocation8], 512
        %v1355 = vld [vmem:[%s1354] sm:$0xff]
        %v1356 = vld [vmem:[%s1354 + $0x8] sm:$0xff]
        %v1357 = vld [vmem:[%s1354 + $0x10] sm:$0xff]
        %v1358 = vld [vmem:[%s1354 + $0x18] sm:$0xff]
        %v1359 = vld [vmem:[%s1354 + $0x20] sm:$0xff]
        %v1360 = vld [vmem:[%s1354 + $0x28] sm:$0xff]
        %v1361 = vld [vmem:[%s1354 + $0x30] sm:$0xff]
        %v1362 = vld [vmem:[%s1354 + $0x38] sm:$0xff]
        %v1363 = vld [vmem:[%s1354 + $0x40] sm:$0xff]
        %v1364 = vld [vmem:[%s1354 + $0x48] sm:$0xff]
        %v1365 = vld [vmem:[%s1354 + $0x50] sm:$0xff]
        %v1366 = vld [vmem:[%s1354 + $0x58] sm:$0xff]
        %v1367 = vld [vmem:[%s1354 + $0x60] sm:$0xff]
        %v1368 = vld [vmem:[%s1354 + $0x68] sm:$0xff]
        %v1369 = vld [vmem:[%s1354 + $0x70] sm:$0xff]
        %v1370 = vld [vmem:[%s1354 + $0x78] sm:$0xff]
        %1371 = vmatpush.msra.mxu0 %v1370
        %1372 = vmatpush.msra.mxu0 %v1369
        %1373 = vmatpush.msra.mxu0 %v1368
        %1374 = vmatpush.msra.mxu0 %v1367
        %1375 = vmatpush.msra.mxu0 %v1366
        %1376 = vmatpush.msra.mxu0 %v1365
        %1377 = vmatpush.msra.mxu0 %v1364
        %1378 = vmatpush.msra.mxu0 %v1363
        %1379 = vmatpush.msra.mxu0 %v1362
        %1380 = vmatpush.msra.mxu0 %v1361
        %1381 = vmatpush.msra.mxu0 %v1360
        %1382 = vmatpush.msra.mxu0 %v1359
        %1383 = vmatpush.msra.mxu0 %v1358
        %1384 = vmatpush.msra.mxu0 %v1357
        %1385 = vmatpush.msra.mxu0 %v1356
        %1386 = vmatpush.msra.mxu0 %v1355
        %1387 = vmatmul.f32.gmra.mxu0 %v1158
        %v1388 = vpop.f32.mrf.mxu0
        %v1389 = vadd.f32 0.0, %v1388
        %1390 = vmatmul.f32.gmra.mxu0 %v1159
        %v1391 = vpop.f32.mrf.mxu0
        %v1392 = vadd.f32 0.0, %v1391
        %1393 = vmatmul.f32.gmra.mxu0 %v1160
        %v1394 = vpop.f32.mrf.mxu0
        %v1395 = vadd.f32 0.0, %v1394
        %1396 = vmatmul.f32.gmra.mxu0 %v1161
        %v1397 = vpop.f32.mrf.mxu0
        %v1398 = vadd.f32 0.0, %v1397
        %1399 = vmatmul.f32.gmra.mxu0 %v1162
        %v1400 = vpop.f32.mrf.mxu0
        %v1401 = vadd.f32 0.0, %v1400
        %1402 = vmatmul.f32.gmra.mxu0 %v1163
        %v1403 = vpop.f32.mrf.mxu0
        %v1404 = vadd.f32 0.0, %v1403
        %1405 = vmatmul.f32.gmra.mxu0 %v1164
        %v1406 = vpop.f32.mrf.mxu0
        %v1407 = vadd.f32 0.0, %v1406
        %1408 = vmatmul.f32.gmra.mxu0 %v1165
        %v1409 = vpop.f32.mrf.mxu0
        %v1410 = vadd.f32 0.0, %v1409
        %1411 = vmatmul.f32.gmra.mxu0 %v1166
        %v1412 = vpop.f32.mrf.mxu0
        %v1413 = vadd.f32 0.0, %v1412
        %1414 = vmatmul.f32.gmra.mxu0 %v1167
        %v1415 = vpop.f32.mrf.mxu0
        %v1416 = vadd.f32 0.0, %v1415
        %1417 = vmatmul.f32.gmra.mxu0 %v1168
        %v1418 = vpop.f32.mrf.mxu0
        %v1419 = vadd.f32 0.0, %v1418
        %1420 = vmatmul.f32.gmra.mxu0 %v1169
        %v1421 = vpop.f32.mrf.mxu0
        %v1422 = vadd.f32 0.0, %v1421
        %1423 = vmatmul.f32.gmra.mxu0 %v1170
        %v1424 = vpop.f32.mrf.mxu0
        %v1425 = vadd.f32 0.0, %v1424
        %1426 = vmatmul.f32.gmra.mxu0 %v1171
        %v1427 = vpop.f32.mrf.mxu0
        %v1428 = vadd.f32 0.0, %v1427
        %1429 = vmatmul.f32.gmra.mxu0 %v1172
        %v1430 = vpop.f32.mrf.mxu0
        %v1431 = vadd.f32 0.0, %v1430
        %1432 = vmatmul.f32.gmra.mxu0 %v1173
        %v1433 = vpop.f32.mrf.mxu0
        %v1434 = vadd.f32 0.0, %v1433
        %1435 = vmatmul.f32.gmra.mxu0 %v1174
        %v1436 = vpop.f32.mrf.mxu0
        %v1437 = vadd.f32 0.0, %v1436
        %1438 = vmatmul.f32.gmra.mxu0 %v1175
        %v1439 = vpop.f32.mrf.mxu0
        %v1440 = vadd.f32 0.0, %v1439
        %1441 = vmatmul.f32.gmra.mxu0 %v1176
        %v1442 = vpop.f32.mrf.mxu0
        %v1443 = vadd.f32 0.0, %v1442
        %1444 = vmatmul.f32.gmra.mxu0 %v1177
        %v1445 = vpop.f32.mrf.mxu0
        %v1446 = vadd.f32 0.0, %v1445
        %1447 = vmatmul.f32.gmra.mxu0 %v1178
        %v1448 = vpop.f32.mrf.mxu0
        %v1449 = vadd.f32 0.0, %v1448
        %1450 = vmatmul.f32.gmra.mxu0 %v1179
        %v1451 = vpop.f32.mrf.mxu0
        %v1452 = vadd.f32 0.0, %v1451
        %1453 = vmatmul.f32.gmra.mxu0 %v1180
        %v1454 = vpop.f32.mrf.mxu0
        %v1455 = vadd.f32 0.0, %v1454
        %1456 = vmatmul.f32.gmra.mxu0 %v1181
        %v1457 = vpop.f32.mrf.mxu0
        %v1458 = vadd.f32 0.0, %v1457
        %1459 = vmatmul.f32.gmra.mxu0 %v1182
        %v1460 = vpop.f32.mrf.mxu0
        %v1461 = vadd.f32 0.0, %v1460
        %1462 = vmatmul.f32.gmra.mxu0 %v1183
        %v1463 = vpop.f32.mrf.mxu0
        %v1464 = vadd.f32 0.0, %v1463
        %1465 = vmatmul.f32.gmra.mxu0 %v1184
        %v1466 = vpop.f32.mrf.mxu0
        %v1467 = vadd.f32 0.0, %v1466
        %1468 = vmatmul.f32.gmra.mxu0 %v1185
        %v1469 = vpop.f32.mrf.mxu0
        %v1470 = vadd.f32 0.0, %v1469
        %1471 = vmatmul.f32.gmra.mxu0 %v1186
        %v1472 = vpop.f32.mrf.mxu0
        %v1473 = vadd.f32 0.0, %v1472
        %1474 = vmatmul.f32.gmra.mxu0 %v1187
        %v1475 = vpop.f32.mrf.mxu0
        %v1476 = vadd.f32 0.0, %v1475
        %1477 = vmatmul.f32.gmra.mxu0 %v1188
        %v1478 = vpop.f32.mrf.mxu0
        %v1479 = vadd.f32 0.0, %v1478
        %1480 = vmatmul.f32.gmra.mxu0 %v1189
        %v1481 = vpop.f32.mrf.mxu0
        %v1482 = vadd.f32 0.0, %v1481
        %1483 = vdwg.mxu0
        %v1484 = vadd.f32 %v1322, %v1389
        %v1485 = vadd.f32 %v1323, %v1392
        %v1486 = vadd.f32 %v1324, %v1395
        %v1487 = vadd.f32 %v1325, %v1398
        %v1488 = vadd.f32 %v1326, %v1401
        %v1489 = vadd.f32 %v1327, %v1404
        %v1490 = vadd.f32 %v1328, %v1407
        %v1491 = vadd.f32 %v1329, %v1410
        %v1492 = vadd.f32 %v1330, %v1413
        %v1493 = vadd.f32 %v1331, %v1416
        %v1494 = vadd.f32 %v1332, %v1419
        %v1495 = vadd.f32 %v1333, %v1422
        %v1496 = vadd.f32 %v1334, %v1425
        %v1497 = vadd.f32 %v1335, %v1428
        %v1498 = vadd.f32 %v1336, %v1431
        %v1499 = vadd.f32 %v1337, %v1434
        %v1500 = vadd.f32 %v1338, %v1437
        %v1501 = vadd.f32 %v1339, %v1440
        %v1502 = vadd.f32 %v1340, %v1443
        %v1503 = vadd.f32 %v1341, %v1446
        %v1504 = vadd.f32 %v1342, %v1449
        %v1505 = vadd.f32 %v1343, %v1452
        %v1506 = vadd.f32 %v1344, %v1455
        %v1507 = vadd.f32 %v1345, %v1458
        %v1508 = vadd.f32 %v1346, %v1461
        %v1509 = vadd.f32 %v1347, %v1464
        %v1510 = vadd.f32 %v1348, %v1467
        %v1511 = vadd.f32 %v1349, %v1470
        %v1512 = vadd.f32 %v1350, %v1473
        %v1513 = vadd.f32 %v1351, %v1476
        %v1514 = vadd.f32 %v1352, %v1479
        %v1515 = vadd.f32 %v1353, %v1482
        %s1516 = scalar_lea.vmem [#allocation8], 896
        %v1517 = vld [vmem:[%s1516] sm:$0xff]
        %v1518 = vld [vmem:[%s1516 + $0x8] sm:$0xff]
        %v1519 = vld [vmem:[%s1516 + $0x10] sm:$0xff]
        %v1520 = vld [vmem:[%s1516 + $0x18] sm:$0xff]
        %v1521 = vld [vmem:[%s1516 + $0x20] sm:$0xff]
        %v1522 = vld [vmem:[%s1516 + $0x28] sm:$0xff]
        %v1523 = vld [vmem:[%s1516 + $0x30] sm:$0xff]
        %v1524 = vld [vmem:[%s1516 + $0x38] sm:$0xff]
        %v1525 = vld [vmem:[%s1516 + $0x40] sm:$0xff]
        %v1526 = vld [vmem:[%s1516 + $0x48] sm:$0xff]
        %v1527 = vld [vmem:[%s1516 + $0x50] sm:$0xff]
        %v1528 = vld [vmem:[%s1516 + $0x58] sm:$0xff]
        %v1529 = vld [vmem:[%s1516 + $0x60] sm:$0xff]
        %v1530 = vld [vmem:[%s1516 + $0x68] sm:$0xff]
        %v1531 = vld [vmem:[%s1516 + $0x70] sm:$0xff]
        %v1532 = vld [vmem:[%s1516 + $0x78] sm:$0xff]
        %1533 = vmatpush.msra.mxu0 %v1532
        %1534 = vmatpush.msra.mxu0 %v1531
        %1535 = vmatpush.msra.mxu0 %v1530
        %1536 = vmatpush.msra.mxu0 %v1529
        %1537 = vmatpush.msra.mxu0 %v1528
        %1538 = vmatpush.msra.mxu0 %v1527
        %1539 = vmatpush.msra.mxu0 %v1526
        %1540 = vmatpush.msra.mxu0 %v1525
        %1541 = vmatpush.msra.mxu0 %v1524
        %1542 = vmatpush.msra.mxu0 %v1523
        %1543 = vmatpush.msra.mxu0 %v1522
        %1544 = vmatpush.msra.mxu0 %v1521
        %1545 = vmatpush.msra.mxu0 %v1520
        %1546 = vmatpush.msra.mxu0 %v1519
        %1547 = vmatpush.msra.mxu0 %v1518
        %1548 = vmatpush.msra.mxu0 %v1517
        %1549 = vmatmul.f32.gmra.mxu0 %v1160
        %v1550 = vpop.f32.mrf.mxu0
        %v1551 = vadd.f32 0.0, %v1550
        %1552 = vmatmul.f32.gmra.mxu0 %v1161
        %v1553 = vpop.f32.mrf.mxu0
        %v1554 = vadd.f32 0.0, %v1553
        %1555 = vmatmul.f32.gmra.mxu0 %v1162
        %v1556 = vpop.f32.mrf.mxu0
        %v1557 = vadd.f32 0.0, %v1556
        %1558 = vmatmul.f32.gmra.mxu0 %v1163
        %v1559 = vpop.f32.mrf.mxu0
        %v1560 = vadd.f32 0.0, %v1559
        %1561 = vmatmul.f32.gmra.mxu0 %v1164
        %v1562 = vpop.f32.mrf.mxu0
        %v1563 = vadd.f32 0.0, %v1562
        %1564 = vmatmul.f32.gmra.mxu0 %v1165
        %v1565 = vpop.f32.mrf.mxu0
        %v1566 = vadd.f32 0.0, %v1565
        %1567 = vmatmul.f32.gmra.mxu0 %v1166
        %v1568 = vpop.f32.mrf.mxu0
        %v1569 = vadd.f32 0.0, %v1568
        %1570 = vmatmul.f32.gmra.mxu0 %v1167
        %v1571 = vpop.f32.mrf.mxu0
        %v1572 = vadd.f32 0.0, %v1571
        %1573 = vmatmul.f32.gmra.mxu0 %v1168
        %v1574 = vpop.f32.mrf.mxu0
        %v1575 = vadd.f32 0.0, %v1574
        %1576 = vmatmul.f32.gmra.mxu0 %v1169
        %v1577 = vpop.f32.mrf.mxu0
        %v1578 = vadd.f32 0.0, %v1577
        %1579 = vmatmul.f32.gmra.mxu0 %v1170
        %v1580 = vpop.f32.mrf.mxu0
        %v1581 = vadd.f32 0.0, %v1580
        %1582 = vmatmul.f32.gmra.mxu0 %v1171
        %v1583 = vpop.f32.mrf.mxu0
        %v1584 = vadd.f32 0.0, %v1583
        %1585 = vmatmul.f32.gmra.mxu0 %v1172
        %v1586 = vpop.f32.mrf.mxu0
        %v1587 = vadd.f32 0.0, %v1586
        %1588 = vmatmul.f32.gmra.mxu0 %v1173
        %v1589 = vpop.f32.mrf.mxu0
        %v1590 = vadd.f32 0.0, %v1589
        %1591 = vmatmul.f32.gmra.mxu0 %v1174
        %v1592 = vpop.f32.mrf.mxu0
        %v1593 = vadd.f32 0.0, %v1592
        %1594 = vmatmul.f32.gmra.mxu0 %v1175
        %v1595 = vpop.f32.mrf.mxu0
        %v1596 = vadd.f32 0.0, %v1595
        %1597 = vmatmul.f32.gmra.mxu0 %v1176
        %v1598 = vpop.f32.mrf.mxu0
        %v1599 = vadd.f32 0.0, %v1598
        %1600 = vmatmul.f32.gmra.mxu0 %v1177
        %v1601 = vpop.f32.mrf.mxu0
        %v1602 = vadd.f32 0.0, %v1601
        %1603 = vmatmul.f32.gmra.mxu0 %v1178
        %v1604 = vpop.f32.mrf.mxu0
        %v1605 = vadd.f32 0.0, %v1604
        %1606 = vmatmul.f32.gmra.mxu0 %v1179
        %v1607 = vpop.f32.mrf.mxu0
        %v1608 = vadd.f32 0.0, %v1607
        %1609 = vmatmul.f32.gmra.mxu0 %v1180
        %v1610 = vpop.f32.mrf.mxu0
        %v1611 = vadd.f32 0.0, %v1610
        %1612 = vmatmul.f32.gmra.mxu0 %v1181
        %v1613 = vpop.f32.mrf.mxu0
        %v1614 = vadd.f32 0.0, %v1613
        %1615 = vmatmul.f32.gmra.mxu0 %v1182
        %v1616 = vpop.f32.mrf.mxu0
        %v1617 = vadd.f32 0.0, %v1616
        %1618 = vmatmul.f32.gmra.mxu0 %v1183
        %v1619 = vpop.f32.mrf.mxu0
        %v1620 = vadd.f32 0.0, %v1619
        %1621 = vmatmul.f32.gmra.mxu0 %v1184
        %v1622 = vpop.f32.mrf.mxu0
        %v1623 = vadd.f32 0.0, %v1622
        %1624 = vmatmul.f32.gmra.mxu0 %v1185
        %v1625 = vpop.f32.mrf.mxu0
        %v1626 = vadd.f32 0.0, %v1625
        %1627 = vmatmul.f32.gmra.mxu0 %v1186
        %v1628 = vpop.f32.mrf.mxu0
        %v1629 = vadd.f32 0.0, %v1628
        %1630 = vmatmul.f32.gmra.mxu0 %v1187
        %v1631 = vpop.f32.mrf.mxu0
        %v1632 = vadd.f32 0.0, %v1631
        %1633 = vmatmul.f32.gmra.mxu0 %v1188
        %v1634 = vpop.f32.mrf.mxu0
        %v1635 = vadd.f32 0.0, %v1634
        %1636 = vmatmul.f32.gmra.mxu0 %v1189
        %v1637 = vpop.f32.mrf.mxu0
        %v1638 = vadd.f32 0.0, %v1637
        %1639 = vmatmul.f32.gmra.mxu0 %v1190
        %v1640 = vpop.f32.mrf.mxu0
        %v1641 = vadd.f32 0.0, %v1640
        %1642 = vmatmul.f32.gmra.mxu0 %v1191
        %v1643 = vpop.f32.mrf.mxu0
        %v1644 = vadd.f32 0.0, %v1643
        %1645 = vdwg.mxu0
        %v1646 = vadd.f32 %v1484, %v1551
        %v1647 = vadd.f32 %v1485, %v1554
        %v1648 = vadd.f32 %v1486, %v1557
        %v1649 = vadd.f32 %v1487, %v1560
        %v1650 = vadd.f32 %v1488, %v1563
        %v1651 = vadd.f32 %v1489, %v1566
        %v1652 = vadd.f32 %v1490, %v1569
        %v1653 = vadd.f32 %v1491, %v1572
        %v1654 = vadd.f32 %v1492, %v1575
        %v1655 = vadd.f32 %v1493, %v1578
        %v1656 = vadd.f32 %v1494, %v1581
        %v1657 = vadd.f32 %v1495, %v1584
        %v1658 = vadd.f32 %v1496, %v1587
        %v1659 = vadd.f32 %v1497, %v1590
        %v1660 = vadd.f32 %v1498, %v1593
        %v1661 = vadd.f32 %v1499, %v1596
        %v1662 = vadd.f32 %v1500, %v1599
        %v1663 = vadd.f32 %v1501, %v1602
        %v1664 = vadd.f32 %v1502, %v1605
        %v1665 = vadd.f32 %v1503, %v1608
        %v1666 = vadd.f32 %v1504, %v1611
        %v1667 = vadd.f32 %v1505, %v1614
        %v1668 = vadd.f32 %v1506, %v1617
        %v1669 = vadd.f32 %v1507, %v1620
        %v1670 = vadd.f32 %v1508, %v1623
        %v1671 = vadd.f32 %v1509, %v1626
        %v1672 = vadd.f32 %v1510, %v1629
        %v1673 = vadd.f32 %v1511, %v1632
        %v1674 = vadd.f32 %v1512, %v1635
        %v1675 = vadd.f32 %v1513, %v1638
        %v1676 = vadd.f32 %v1514, %v1641
        %v1677 = vadd.f32 %v1515, %v1644
        %v1678 = vld [vmem:[#allocation2 + $0x2] sm:$0xff]
        %v1679 = vld [vmem:[#allocation2 + $0xa] sm:$0xff]
        %v1680 = vld [vmem:[#allocation2 + $0x1a] sm:$0xff]
        %v1681 = vld [vmem:[#allocation2 + $0x22] sm:$0xff]
        %v1682 = vld [vmem:[#allocation2 + $0x32] sm:$0xff]
        %v1683 = vld [vmem:[#allocation2 + $0x3a] sm:$0xff]
        %v1684 = vld [vmem:[#allocation2 + $0x4a] sm:$0xff]
        %v1685 = vld [vmem:[#allocation2 + $0x52] sm:$0xff]
        %v1686 = vld [vmem:[#allocation2 + $0x62] sm:$0xff]
        %v1687 = vld [vmem:[#allocation2 + $0x6a] sm:$0xff]
        %v1688 = vld [vmem:[#allocation2 + $0x7a] sm:$0xff]
        %v1689 = vld [vmem:[#allocation2 + $0x82] sm:$0xff]
        %v1690 = vld [vmem:[#allocation2 + $0x92] sm:$0xff]
        %v1691 = vld [vmem:[#allocation2 + $0x9a] sm:$0xff]
        %v1692 = vld [vmem:[#allocation2 + $0xaa] sm:$0xff]
        %v1693 = vld [vmem:[#allocation2 + $0xb2] sm:$0xff]
        %v1694 = vld [vmem:[#allocation2 + $0xc2] sm:$0xff]
        %v1695 = vld [vmem:[#allocation2 + $0xca] sm:$0xff]
        %v1696 = vld [vmem:[#allocation2 + $0xda] sm:$0xff]
        %v1697 = vld [vmem:[#allocation2 + $0xe2] sm:$0xff]
        %v1698 = vld [vmem:[#allocation2 + $0xf2] sm:$0xff]
        %v1699 = vld [vmem:[#allocation2 + $0xfa] sm:$0xff]
        %v1700 = vld [vmem:[#allocation2 + $0x10a] sm:$0xff]
        %v1701 = vld [vmem:[#allocation2 + $0x112] sm:$0xff]
        %v1702 = vld [vmem:[#allocation2 + $0x122] sm:$0xff]
        %v1703 = vld [vmem:[#allocation2 + $0x12a] sm:$0xff]
        %v1704 = vld [vmem:[#allocation2 + $0x13a] sm:$0xff]
        %v1705 = vld [vmem:[#allocation2 + $0x142] sm:$0xff]
        %v1706 = vld [vmem:[#allocation2 + $0x152] sm:$0xff]
        %v1707 = vld [vmem:[#allocation2 + $0x15a] sm:$0xff]
        %v1708 = vld [vmem:[#allocation2 + $0x16a] sm:$0xff]
        %v1709 = vld [vmem:[#allocation2 + $0x172] sm:$0xff]
        %v1710 = vld [vmem:[#allocation2 + $0x182] sm:$0xff]
        %v1711 = vld [vmem:[#allocation2 + $0x18a] sm:$0xff]
        %v1712 = vld [vmem:[#allocation2 + $0x19a] sm:$0xff]
        %v1713 = vld [vmem:[#allocation2 + $0x1a2] sm:$0xff]
        %vm1714 = vcmp.ne.s32.totalorder %v587, 15
        %vm1715 = vcmp.ne.s32.totalorder %v588, 15
        %v1716 = vsel %vm1714, 1, 0
        %v1717 = vsel %vm1715, 1, 0
        %vm1718 = vcmp.eq.s32.totalorder %v1716, 1
        %vm1719 = vcmp.eq.s32.totalorder %v1717, 1
        %v1720 = vsel %vm1718, %v1678, 0.0
        %v1721 = vsel %vm1719, %v1679, 0.0
        %v1722 = vsel %vm1718, %v1680, 0.0
        %v1723 = vsel %vm1719, %v1681, 0.0
        %v1724 = vsel %vm1718, %v1682, 0.0
        %v1725 = vsel %vm1719, %v1683, 0.0
        %v1726 = vsel %vm1718, %v1684, 0.0
        %v1727 = vsel %vm1719, %v1685, 0.0
        %v1728 = vsel %vm1718, %v1686, 0.0
        %v1729 = vsel %vm1719, %v1687, 0.0
        %v1730 = vsel %vm1718, %v1688, 0.0
        %v1731 = vsel %vm1719, %v1689, 0.0
        %v1732 = vsel %vm1718, %v1690, 0.0
        %v1733 = vsel %vm1719, %v1691, 0.0
        %v1734 = vsel %vm1718, %v1692, 0.0
        %v1735 = vsel %vm1719, %v1693, 0.0
        %v1736 = vsel %vm1718, %v1694, 0.0
        %v1737 = vsel %vm1719, %v1695, 0.0
        %v1738 = vsel %vm1718, %v1696, 0.0
        %v1739 = vsel %vm1719, %v1697, 0.0
        %v1740 = vsel %vm1718, %v1698, 0.0
        %v1741 = vsel %vm1719, %v1699, 0.0
        %v1742 = vsel %vm1718, %v1700, 0.0
        %v1743 = vsel %vm1719, %v1701, 0.0
        %v1744 = vsel %vm1718, %v1702, 0.0
        %v1745 = vsel %vm1719, %v1703, 0.0
        %v1746 = vsel %vm1718, %v1704, 0.0
        %v1747 = vsel %vm1719, %v1705, 0.0
        %v1748 = vsel %vm1718, %v1706, 0.0
        %v1749 = vsel %vm1719, %v1707, 0.0
        %v1750 = vsel %vm1718, %v1708, 0.0
        %v1751 = vsel %vm1719, %v1709, 0.0
        %v1752 = vsel %vm1718, %v1710, 0.0
        %v1753 = vsel %vm1719, %v1711, 0.0
        %v1754 = vsel %vm1718, %v1712, 0.0
        %v1755 = vsel %vm1719, %v1713, 0.0
        %s1756 = scalar_lea.vmem [#allocation8], 256
        %v1757 = vld [vmem:[%s1756] sm:$0xff]
        %v1758 = vld [vmem:[%s1756 + $0x8] sm:$0xff]
        %v1759 = vld [vmem:[%s1756 + $0x10] sm:$0xff]
        %v1760 = vld [vmem:[%s1756 + $0x18] sm:$0xff]
        %v1761 = vld [vmem:[%s1756 + $0x20] sm:$0xff]
        %v1762 = vld [vmem:[%s1756 + $0x28] sm:$0xff]
        %v1763 = vld [vmem:[%s1756 + $0x30] sm:$0xff]
        %v1764 = vld [vmem:[%s1756 + $0x38] sm:$0xff]
        %v1765 = vld [vmem:[%s1756 + $0x40] sm:$0xff]
        %v1766 = vld [vmem:[%s1756 + $0x48] sm:$0xff]
        %v1767 = vld [vmem:[%s1756 + $0x50] sm:$0xff]
        %v1768 = vld [vmem:[%s1756 + $0x58] sm:$0xff]
        %v1769 = vld [vmem:[%s1756 + $0x60] sm:$0xff]
        %v1770 = vld [vmem:[%s1756 + $0x68] sm:$0xff]
        %v1771 = vld [vmem:[%s1756 + $0x70] sm:$0xff]
        %v1772 = vld [vmem:[%s1756 + $0x78] sm:$0xff]
        %1773 = vmatpush.msra.mxu0 %v1772
        %1774 = vmatpush.msra.mxu0 %v1771
        %1775 = vmatpush.msra.mxu0 %v1770
        %1776 = vmatpush.msra.mxu0 %v1769
        %1777 = vmatpush.msra.mxu0 %v1768
        %1778 = vmatpush.msra.mxu0 %v1767
        %1779 = vmatpush.msra.mxu0 %v1766
        %1780 = vmatpush.msra.mxu0 %v1765
        %1781 = vmatpush.msra.mxu0 %v1764
        %1782 = vmatpush.msra.mxu0 %v1763
        %1783 = vmatpush.msra.mxu0 %v1762
        %1784 = vmatpush.msra.mxu0 %v1761
        %1785 = vmatpush.msra.mxu0 %v1760
        %1786 = vmatpush.msra.mxu0 %v1759
        %1787 = vmatpush.msra.mxu0 %v1758
        %1788 = vmatpush.msra.mxu0 %v1757
        %1789 = vmatmul.f32.gmra.mxu0 %v1720
        %v1790 = vpop.f32.mrf.mxu0
        %v1791 = vadd.f32 0.0, %v1790
        %1792 = vmatmul.f32.gmra.mxu0 %v1721
        %v1793 = vpop.f32.mrf.mxu0
        %v1794 = vadd.f32 0.0, %v1793
        %1795 = vmatmul.f32.gmra.mxu0 %v1722
        %v1796 = vpop.f32.mrf.mxu0
        %v1797 = vadd.f32 0.0, %v1796
        %1798 = vmatmul.f32.gmra.mxu0 %v1723
        %v1799 = vpop.f32.mrf.mxu0
        %v1800 = vadd.f32 0.0, %v1799
        %1801 = vmatmul.f32.gmra.mxu0 %v1724
        %v1802 = vpop.f32.mrf.mxu0
        %v1803 = vadd.f32 0.0, %v1802
        %1804 = vmatmul.f32.gmra.mxu0 %v1725
        %v1805 = vpop.f32.mrf.mxu0
        %v1806 = vadd.f32 0.0, %v1805
        %1807 = vmatmul.f32.gmra.mxu0 %v1726
        %v1808 = vpop.f32.mrf.mxu0
        %v1809 = vadd.f32 0.0, %v1808
        %1810 = vmatmul.f32.gmra.mxu0 %v1727
        %v1811 = vpop.f32.mrf.mxu0
        %v1812 = vadd.f32 0.0, %v1811
        %1813 = vmatmul.f32.gmra.mxu0 %v1728
        %v1814 = vpop.f32.mrf.mxu0
        %v1815 = vadd.f32 0.0, %v1814
        %1816 = vmatmul.f32.gmra.mxu0 %v1729
        %v1817 = vpop.f32.mrf.mxu0
        %v1818 = vadd.f32 0.0, %v1817
        %1819 = vmatmul.f32.gmra.mxu0 %v1730
        %v1820 = vpop.f32.mrf.mxu0
        %v1821 = vadd.f32 0.0, %v1820
        %1822 = vmatmul.f32.gmra.mxu0 %v1731
        %v1823 = vpop.f32.mrf.mxu0
        %v1824 = vadd.f32 0.0, %v1823
        %1825 = vmatmul.f32.gmra.mxu0 %v1732
        %v1826 = vpop.f32.mrf.mxu0
        %v1827 = vadd.f32 0.0, %v1826
        %1828 = vmatmul.f32.gmra.mxu0 %v1733
        %v1829 = vpop.f32.mrf.mxu0
        %v1830 = vadd.f32 0.0, %v1829
        %1831 = vmatmul.f32.gmra.mxu0 %v1734
        %v1832 = vpop.f32.mrf.mxu0
        %v1833 = vadd.f32 0.0, %v1832
        %1834 = vmatmul.f32.gmra.mxu0 %v1735
        %v1835 = vpop.f32.mrf.mxu0
        %v1836 = vadd.f32 0.0, %v1835
        %1837 = vmatmul.f32.gmra.mxu0 %v1736
        %v1838 = vpop.f32.mrf.mxu0
        %v1839 = vadd.f32 0.0, %v1838
        %1840 = vmatmul.f32.gmra.mxu0 %v1737
        %v1841 = vpop.f32.mrf.mxu0
        %v1842 = vadd.f32 0.0, %v1841
        %1843 = vmatmul.f32.gmra.mxu0 %v1738
        %v1844 = vpop.f32.mrf.mxu0
        %v1845 = vadd.f32 0.0, %v1844
        %1846 = vmatmul.f32.gmra.mxu0 %v1739
        %v1847 = vpop.f32.mrf.mxu0
        %v1848 = vadd.f32 0.0, %v1847
        %1849 = vmatmul.f32.gmra.mxu0 %v1740
        %v1850 = vpop.f32.mrf.mxu0
        %v1851 = vadd.f32 0.0, %v1850
        %1852 = vmatmul.f32.gmra.mxu0 %v1741
        %v1853 = vpop.f32.mrf.mxu0
        %v1854 = vadd.f32 0.0, %v1853
        %1855 = vmatmul.f32.gmra.mxu0 %v1742
        %v1856 = vpop.f32.mrf.mxu0
        %v1857 = vadd.f32 0.0, %v1856
        %1858 = vmatmul.f32.gmra.mxu0 %v1743
        %v1859 = vpop.f32.mrf.mxu0
        %v1860 = vadd.f32 0.0, %v1859
        %1861 = vmatmul.f32.gmra.mxu0 %v1744
        %v1862 = vpop.f32.mrf.mxu0
        %v1863 = vadd.f32 0.0, %v1862
        %1864 = vmatmul.f32.gmra.mxu0 %v1745
        %v1865 = vpop.f32.mrf.mxu0
        %v1866 = vadd.f32 0.0, %v1865
        %1867 = vmatmul.f32.gmra.mxu0 %v1746
        %v1868 = vpop.f32.mrf.mxu0
        %v1869 = vadd.f32 0.0, %v1868
        %1870 = vmatmul.f32.gmra.mxu0 %v1747
        %v1871 = vpop.f32.mrf.mxu0
        %v1872 = vadd.f32 0.0, %v1871
        %1873 = vmatmul.f32.gmra.mxu0 %v1748
        %v1874 = vpop.f32.mrf.mxu0
        %v1875 = vadd.f32 0.0, %v1874
        %1876 = vmatmul.f32.gmra.mxu0 %v1749
        %v1877 = vpop.f32.mrf.mxu0
        %v1878 = vadd.f32 0.0, %v1877
        %1879 = vmatmul.f32.gmra.mxu0 %v1750
        %v1880 = vpop.f32.mrf.mxu0
        %v1881 = vadd.f32 0.0, %v1880
        %1882 = vmatmul.f32.gmra.mxu0 %v1751
        %v1883 = vpop.f32.mrf.mxu0
        %v1884 = vadd.f32 0.0, %v1883
        %1885 = vdwg.mxu0
        %v1886 = vadd.f32 %v1646, %v1791
        %v1887 = vadd.f32 %v1647, %v1794
        %v1888 = vadd.f32 %v1648, %v1797
        %v1889 = vadd.f32 %v1649, %v1800
        %v1890 = vadd.f32 %v1650, %v1803
        %v1891 = vadd.f32 %v1651, %v1806
        %v1892 = vadd.f32 %v1652, %v1809
        %v1893 = vadd.f32 %v1653, %v1812
        %v1894 = vadd.f32 %v1654, %v1815
        %v1895 = vadd.f32 %v1655, %v1818
        %v1896 = vadd.f32 %v1656, %v1821
        %v1897 = vadd.f32 %v1657, %v1824
        %v1898 = vadd.f32 %v1658, %v1827
        %v1899 = vadd.f32 %v1659, %v1830
        %v1900 = vadd.f32 %v1660, %v1833
        %v1901 = vadd.f32 %v1661, %v1836
        %v1902 = vadd.f32 %v1662, %v1839
        %v1903 = vadd.f32 %v1663, %v1842
        %v1904 = vadd.f32 %v1664, %v1845
        %v1905 = vadd.f32 %v1665, %v1848
        %v1906 = vadd.f32 %v1666, %v1851
        %v1907 = vadd.f32 %v1667, %v1854
        %v1908 = vadd.f32 %v1668, %v1857
        %v1909 = vadd.f32 %v1669, %v1860
        %v1910 = vadd.f32 %v1670, %v1863
        %v1911 = vadd.f32 %v1671, %v1866
        %v1912 = vadd.f32 %v1672, %v1869
        %v1913 = vadd.f32 %v1673, %v1872
        %v1914 = vadd.f32 %v1674, %v1875
        %v1915 = vadd.f32 %v1675, %v1878
        %v1916 = vadd.f32 %v1676, %v1881
        %v1917 = vadd.f32 %v1677, %v1884
        %s1918 = scalar_lea.vmem [#allocation8], 640
        %v1919 = vld [vmem:[%s1918] sm:$0xff]
        %v1920 = vld [vmem:[%s1918 + $0x8] sm:$0xff]
        %v1921 = vld [vmem:[%s1918 + $0x10] sm:$0xff]
        %v1922 = vld [vmem:[%s1918 + $0x18] sm:$0xff]
        %v1923 = vld [vmem:[%s1918 + $0x20] sm:$0xff]
        %v1924 = vld [vmem:[%s1918 + $0x28] sm:$0xff]
        %v1925 = vld [vmem:[%s1918 + $0x30] sm:$0xff]
        %v1926 = vld [vmem:[%s1918 + $0x38] sm:$0xff]
        %v1927 = vld [vmem:[%s1918 + $0x40] sm:$0xff]
        %v1928 = vld [vmem:[%s1918 + $0x48] sm:$0xff]
        %v1929 = vld [vmem:[%s1918 + $0x50] sm:$0xff]
        %v1930 = vld [vmem:[%s1918 + $0x58] sm:$0xff]
        %v1931 = vld [vmem:[%s1918 + $0x60] sm:$0xff]
        %v1932 = vld [vmem:[%s1918 + $0x68] sm:$0xff]
        %v1933 = vld [vmem:[%s1918 + $0x70] sm:$0xff]
        %v1934 = vld [vmem:[%s1918 + $0x78] sm:$0xff]
        %1935 = vmatpush.msra.mxu0 %v1934
        %1936 = vmatpush.msra.mxu0 %v1933
        %1937 = vmatpush.msra.mxu0 %v1932
        %1938 = vmatpush.msra.mxu0 %v1931
        %1939 = vmatpush.msra.mxu0 %v1930
        %1940 = vmatpush.msra.mxu0 %v1929
        %1941 = vmatpush.msra.mxu0 %v1928
        %1942 = vmatpush.msra.mxu0 %v1927
        %1943 = vmatpush.msra.mxu0 %v1926
        %1944 = vmatpush.msra.mxu0 %v1925
        %1945 = vmatpush.msra.mxu0 %v1924
        %1946 = vmatpush.msra.mxu0 %v1923
        %1947 = vmatpush.msra.mxu0 %v1922
        %1948 = vmatpush.msra.mxu0 %v1921
        %1949 = vmatpush.msra.mxu0 %v1920
        %1950 = vmatpush.msra.mxu0 %v1919
        %1951 = vmatmul.f32.gmra.mxu0 %v1722
        %v1952 = vpop.f32.mrf.mxu0
        %v1953 = vadd.f32 0.0, %v1952
        %1954 = vmatmul.f32.gmra.mxu0 %v1723
        %v1955 = vpop.f32.mrf.mxu0
        %v1956 = vadd.f32 0.0, %v1955
        %1957 = vmatmul.f32.gmra.mxu0 %v1724
        %v1958 = vpop.f32.mrf.mxu0
        %v1959 = vadd.f32 0.0, %v1958
        %1960 = vmatmul.f32.gmra.mxu0 %v1725
        %v1961 = vpop.f32.mrf.mxu0
        %v1962 = vadd.f32 0.0, %v1961
        %1963 = vmatmul.f32.gmra.mxu0 %v1726
        %v1964 = vpop.f32.mrf.mxu0
        %v1965 = vadd.f32 0.0, %v1964
        %1966 = vmatmul.f32.gmra.mxu0 %v1727
        %v1967 = vpop.f32.mrf.mxu0
        %v1968 = vadd.f32 0.0, %v1967
        %1969 = vmatmul.f32.gmra.mxu0 %v1728
        %v1970 = vpop.f32.mrf.mxu0
        %v1971 = vadd.f32 0.0, %v1970
        %1972 = vmatmul.f32.gmra.mxu0 %v1729
        %v1973 = vpop.f32.mrf.mxu0
        %v1974 = vadd.f32 0.0, %v1973
        %1975 = vmatmul.f32.gmra.mxu0 %v1730
        %v1976 = vpop.f32.mrf.mxu0
        %v1977 = vadd.f32 0.0, %v1976
        %1978 = vmatmul.f32.gmra.mxu0 %v1731
        %v1979 = vpop.f32.mrf.mxu0
        %v1980 = vadd.f32 0.0, %v1979
        %1981 = vmatmul.f32.gmra.mxu0 %v1732
        %v1982 = vpop.f32.mrf.mxu0
        %v1983 = vadd.f32 0.0, %v1982
        %1984 = vmatmul.f32.gmra.mxu0 %v1733
        %v1985 = vpop.f32.mrf.mxu0
        %v1986 = vadd.f32 0.0, %v1985
        %1987 = vmatmul.f32.gmra.mxu0 %v1734
        %v1988 = vpop.f32.mrf.mxu0
        %v1989 = vadd.f32 0.0, %v1988
        %1990 = vmatmul.f32.gmra.mxu0 %v1735
        %v1991 = vpop.f32.mrf.mxu0
        %v1992 = vadd.f32 0.0, %v1991
        %1993 = vmatmul.f32.gmra.mxu0 %v1736
        %v1994 = vpop.f32.mrf.mxu0
        %v1995 = vadd.f32 0.0, %v1994
        %1996 = vmatmul.f32.gmra.mxu0 %v1737
        %v1997 = vpop.f32.mrf.mxu0
        %v1998 = vadd.f32 0.0, %v1997
        %1999 = vmatmul.f32.gmra.mxu0 %v1738
        %v2000 = vpop.f32.mrf.mxu0
        %v2001 = vadd.f32 0.0, %v2000
        %2002 = vmatmul.f32.gmra.mxu0 %v1739
        %v2003 = vpop.f32.mrf.mxu0
        %v2004 = vadd.f32 0.0, %v2003
        %2005 = vmatmul.f32.gmra.mxu0 %v1740
        %v2006 = vpop.f32.mrf.mxu0
        %v2007 = vadd.f32 0.0, %v2006
        %2008 = vmatmul.f32.gmra.mxu0 %v1741
        %v2009 = vpop.f32.mrf.mxu0
        %v2010 = vadd.f32 0.0, %v2009
        %2011 = vmatmul.f32.gmra.mxu0 %v1742
        %v2012 = vpop.f32.mrf.mxu0
        %v2013 = vadd.f32 0.0, %v2012
        %2014 = vmatmul.f32.gmra.mxu0 %v1743
        %v2015 = vpop.f32.mrf.mxu0
        %v2016 = vadd.f32 0.0, %v2015
        %2017 = vmatmul.f32.gmra.mxu0 %v1744
        %v2018 = vpop.f32.mrf.mxu0
        %v2019 = vadd.f32 0.0, %v2018
        %2020 = vmatmul.f32.gmra.mxu0 %v1745
        %v2021 = vpop.f32.mrf.mxu0
        %v2022 = vadd.f32 0.0, %v2021
        %2023 = vmatmul.f32.gmra.mxu0 %v1746
        %v2024 = vpop.f32.mrf.mxu0
        %v2025 = vadd.f32 0.0, %v2024
        %2026 = vmatmul.f32.gmra.mxu0 %v1747
        %v2027 = vpop.f32.mrf.mxu0
        %v2028 = vadd.f32 0.0, %v2027
        %2029 = vmatmul.f32.gmra.mxu0 %v1748
        %v2030 = vpop.f32.mrf.mxu0
        %v2031 = vadd.f32 0.0, %v2030
        %2032 = vmatmul.f32.gmra.mxu0 %v1749
        %v2033 = vpop.f32.mrf.mxu0
        %v2034 = vadd.f32 0.0, %v2033
        %2035 = vmatmul.f32.gmra.mxu0 %v1750
        %v2036 = vpop.f32.mrf.mxu0
        %v2037 = vadd.f32 0.0, %v2036
        %2038 = vmatmul.f32.gmra.mxu0 %v1751
        %v2039 = vpop.f32.mrf.mxu0
        %v2040 = vadd.f32 0.0, %v2039
        %2041 = vmatmul.f32.gmra.mxu0 %v1752
        %v2042 = vpop.f32.mrf.mxu0
        %v2043 = vadd.f32 0.0, %v2042
        %2044 = vmatmul.f32.gmra.mxu0 %v1753
        %v2045 = vpop.f32.mrf.mxu0
        %v2046 = vadd.f32 0.0, %v2045
        %2047 = vdwg.mxu0
        %v2048 = vadd.f32 %v1886, %v1953
        %v2049 = vadd.f32 %v1887, %v1956
        %v2050 = vadd.f32 %v1888, %v1959
        %v2051 = vadd.f32 %v1889, %v1962
        %v2052 = vadd.f32 %v1890, %v1965
        %v2053 = vadd.f32 %v1891, %v1968
        %v2054 = vadd.f32 %v1892, %v1971
        %v2055 = vadd.f32 %v1893, %v1974
        %v2056 = vadd.f32 %v1894, %v1977
        %v2057 = vadd.f32 %v1895, %v1980
        %v2058 = vadd.f32 %v1896, %v1983
        %v2059 = vadd.f32 %v1897, %v1986
        %v2060 = vadd.f32 %v1898, %v1989
        %v2061 = vadd.f32 %v1899, %v1992
        %v2062 = vadd.f32 %v1900, %v1995
        %v2063 = vadd.f32 %v1901, %v1998
        %v2064 = vadd.f32 %v1902, %v2001
        %v2065 = vadd.f32 %v1903, %v2004
        %v2066 = vadd.f32 %v1904, %v2007
        %v2067 = vadd.f32 %v1905, %v2010
        %v2068 = vadd.f32 %v1906, %v2013
        %v2069 = vadd.f32 %v1907, %v2016
        %v2070 = vadd.f32 %v1908, %v2019
        %v2071 = vadd.f32 %v1909, %v2022
        %v2072 = vadd.f32 %v1910, %v2025
        %v2073 = vadd.f32 %v1911, %v2028
        %v2074 = vadd.f32 %v1912, %v2031
        %v2075 = vadd.f32 %v1913, %v2034
        %v2076 = vadd.f32 %v1914, %v2037
        %v2077 = vadd.f32 %v1915, %v2040
        %v2078 = vadd.f32 %v1916, %v2043
        %v2079 = vadd.f32 %v1917, %v2046
        %s2080 = scalar_lea.vmem [#allocation8], 1024
        %v2081 = vld [vmem:[%s2080] sm:$0xff]
        %v2082 = vld [vmem:[%s2080 + $0x8] sm:$0xff]
        %v2083 = vld [vmem:[%s2080 + $0x10] sm:$0xff]
        %v2084 = vld [vmem:[%s2080 + $0x18] sm:$0xff]
        %v2085 = vld [vmem:[%s2080 + $0x20] sm:$0xff]
        %v2086 = vld [vmem:[%s2080 + $0x28] sm:$0xff]
        %v2087 = vld [vmem:[%s2080 + $0x30] sm:$0xff]
        %v2088 = vld [vmem:[%s2080 + $0x38] sm:$0xff]
        %v2089 = vld [vmem:[%s2080 + $0x40] sm:$0xff]
        %v2090 = vld [vmem:[%s2080 + $0x48] sm:$0xff]
        %v2091 = vld [vmem:[%s2080 + $0x50] sm:$0xff]
        %v2092 = vld [vmem:[%s2080 + $0x58] sm:$0xff]
        %v2093 = vld [vmem:[%s2080 + $0x60] sm:$0xff]
        %v2094 = vld [vmem:[%s2080 + $0x68] sm:$0xff]
        %v2095 = vld [vmem:[%s2080 + $0x70] sm:$0xff]
        %v2096 = vld [vmem:[%s2080 + $0x78] sm:$0xff]
        %2097 = vmatpush.msra.mxu0 %v2096
        %2098 = vmatpush.msra.mxu0 %v2095
        %2099 = vmatpush.msra.mxu0 %v2094
        %2100 = vmatpush.msra.mxu0 %v2093
        %2101 = vmatpush.msra.mxu0 %v2092
        %2102 = vmatpush.msra.mxu0 %v2091
        %2103 = vmatpush.msra.mxu0 %v2090
        %2104 = vmatpush.msra.mxu0 %v2089
        %2105 = vmatpush.msra.mxu0 %v2088
        %2106 = vmatpush.msra.mxu0 %v2087
        %2107 = vmatpush.msra.mxu0 %v2086
        %2108 = vmatpush.msra.mxu0 %v2085
        %2109 = vmatpush.msra.mxu0 %v2084
        %2110 = vmatpush.msra.mxu0 %v2083
        %2111 = vmatpush.msra.mxu0 %v2082
        %2112 = vmatpush.msra.mxu0 %v2081
        %2113 = vmatmul.f32.gmra.mxu0 %v1724
        %v2114 = vpop.f32.mrf.mxu0
        %v2115 = vadd.f32 0.0, %v2114
        %2116 = vmatmul.f32.gmra.mxu0 %v1725
        %v2117 = vpop.f32.mrf.mxu0
        %v2118 = vadd.f32 0.0, %v2117
        %2119 = vmatmul.f32.gmra.mxu0 %v1726
        %v2120 = vpop.f32.mrf.mxu0
        %v2121 = vadd.f32 0.0, %v2120
        %2122 = vmatmul.f32.gmra.mxu0 %v1727
        %v2123 = vpop.f32.mrf.mxu0
        %v2124 = vadd.f32 0.0, %v2123
        %2125 = vmatmul.f32.gmra.mxu0 %v1728
        %v2126 = vpop.f32.mrf.mxu0
        %v2127 = vadd.f32 0.0, %v2126
        %2128 = vmatmul.f32.gmra.mxu0 %v1729
        %v2129 = vpop.f32.mrf.mxu0
        %v2130 = vadd.f32 0.0, %v2129
        %2131 = vmatmul.f32.gmra.mxu0 %v1730
        %v2132 = vpop.f32.mrf.mxu0
        %v2133 = vadd.f32 0.0, %v2132
        %2134 = vmatmul.f32.gmra.mxu0 %v1731
        %v2135 = vpop.f32.mrf.mxu0
        %v2136 = vadd.f32 0.0, %v2135
        %2137 = vmatmul.f32.gmra.mxu0 %v1732
        %v2138 = vpop.f32.mrf.mxu0
        %v2139 = vadd.f32 0.0, %v2138
        %2140 = vmatmul.f32.gmra.mxu0 %v1733
        %v2141 = vpop.f32.mrf.mxu0
        %v2142 = vadd.f32 0.0, %v2141
        %2143 = vmatmul.f32.gmra.mxu0 %v1734
        %v2144 = vpop.f32.mrf.mxu0
        %v2145 = vadd.f32 0.0, %v2144
        %2146 = vmatmul.f32.gmra.mxu0 %v1735
        %v2147 = vpop.f32.mrf.mxu0
        %v2148 = vadd.f32 0.0, %v2147
        %2149 = vmatmul.f32.gmra.mxu0 %v1736
        %v2150 = vpop.f32.mrf.mxu0
        %v2151 = vadd.f32 0.0, %v2150
        %2152 = vmatmul.f32.gmra.mxu0 %v1737
        %v2153 = vpop.f32.mrf.mxu0
        %v2154 = vadd.f32 0.0, %v2153
        %2155 = vmatmul.f32.gmra.mxu0 %v1738
        %v2156 = vpop.f32.mrf.mxu0
        %v2157 = vadd.f32 0.0, %v2156
        %2158 = vmatmul.f32.gmra.mxu0 %v1739
        %v2159 = vpop.f32.mrf.mxu0
        %v2160 = vadd.f32 0.0, %v2159
        %2161 = vmatmul.f32.gmra.mxu0 %v1740
        %v2162 = vpop.f32.mrf.mxu0
        %v2163 = vadd.f32 0.0, %v2162
        %2164 = vmatmul.f32.gmra.mxu0 %v1741
        %v2165 = vpop.f32.mrf.mxu0
        %v2166 = vadd.f32 0.0, %v2165
        %2167 = vmatmul.f32.gmra.mxu0 %v1742
        %v2168 = vpop.f32.mrf.mxu0
        %v2169 = vadd.f32 0.0, %v2168
        %2170 = vmatmul.f32.gmra.mxu0 %v1743
        %v2171 = vpop.f32.mrf.mxu0
        %v2172 = vadd.f32 0.0, %v2171
        %2173 = vmatmul.f32.gmra.mxu0 %v1744
        %v2174 = vpop.f32.mrf.mxu0
        %v2175 = vadd.f32 0.0, %v2174
        %2176 = vmatmul.f32.gmra.mxu0 %v1745
        %v2177 = vpop.f32.mrf.mxu0
        %v2178 = vadd.f32 0.0, %v2177
        %2179 = vmatmul.f32.gmra.mxu0 %v1746
        %v2180 = vpop.f32.mrf.mxu0
        %v2181 = vadd.f32 0.0, %v2180
        %2182 = vmatmul.f32.gmra.mxu0 %v1747
        %v2183 = vpop.f32.mrf.mxu0
        %v2184 = vadd.f32 0.0, %v2183
        %2185 = vmatmul.f32.gmra.mxu0 %v1748
        %v2186 = vpop.f32.mrf.mxu0
        %v2187 = vadd.f32 0.0, %v2186
        %2188 = vmatmul.f32.gmra.mxu0 %v1749
        %v2189 = vpop.f32.mrf.mxu0
        %v2190 = vadd.f32 0.0, %v2189
        %2191 = vmatmul.f32.gmra.mxu0 %v1750
        %v2192 = vpop.f32.mrf.mxu0
        %v2193 = vadd.f32 0.0, %v2192
        %2194 = vmatmul.f32.gmra.mxu0 %v1751
        %v2195 = vpop.f32.mrf.mxu0
        %v2196 = vadd.f32 0.0, %v2195
        %2197 = vmatmul.f32.gmra.mxu0 %v1752
        %v2198 = vpop.f32.mrf.mxu0
        %v2199 = vadd.f32 0.0, %v2198
        %2200 = vmatmul.f32.gmra.mxu0 %v1753
        %v2201 = vpop.f32.mrf.mxu0
        %v2202 = vadd.f32 0.0, %v2201
        %2203 = vmatmul.f32.gmra.mxu0 %v1754
        %v2204 = vpop.f32.mrf.mxu0
        %v2205 = vadd.f32 0.0, %v2204
        %2206 = vmatmul.f32.gmra.mxu0 %v1755
        %v2207 = vpop.f32.mrf.mxu0
        %v2208 = vadd.f32 0.0, %v2207
        %2209 = vdwg.mxu0
        %v2210 = vadd.f32 %v2048, %v2115
        %v2211 = vadd.f32 %v2049, %v2118
        %v2212 = vadd.f32 %v2050, %v2121
        %v2213 = vadd.f32 %v2051, %v2124
        %v2214 = vadd.f32 %v2052, %v2127
        %v2215 = vadd.f32 %v2053, %v2130
        %v2216 = vadd.f32 %v2054, %v2133
        %v2217 = vadd.f32 %v2055, %v2136
        %v2218 = vadd.f32 %v2056, %v2139
        %v2219 = vadd.f32 %v2057, %v2142
        %v2220 = vadd.f32 %v2058, %v2145
        %v2221 = vadd.f32 %v2059, %v2148
        %v2222 = vadd.f32 %v2060, %v2151
        %v2223 = vadd.f32 %v2061, %v2154
        %v2224 = vadd.f32 %v2062, %v2157
        %v2225 = vadd.f32 %v2063, %v2160
        %v2226 = vadd.f32 %v2064, %v2163
        %v2227 = vadd.f32 %v2065, %v2166
        %v2228 = vadd.f32 %v2066, %v2169
        %v2229 = vadd.f32 %v2067, %v2172
        %v2230 = vadd.f32 %v2068, %v2175
        %v2231 = vadd.f32 %v2069, %v2178
        %v2232 = vadd.f32 %v2070, %v2181
        %v2233 = vadd.f32 %v2071, %v2184
        %v2234 = vadd.f32 %v2072, %v2187
        %v2235 = vadd.f32 %v2073, %v2190
        %v2236 = vadd.f32 %v2074, %v2193
        %v2237 = vadd.f32 %v2075, %v2196
        %v2238 = vadd.f32 %v2076, %v2199
        %v2239 = vadd.f32 %v2077, %v2202
        %v2240 = vadd.f32 %v2078, %v2205
        %v2241 = vadd.f32 %v2079, %v2208
        %v2242 = vmax.f32 %v2210, 0.0
        %v2243 = vmax.f32 %v2211, 0.0
        %v2244 = vmax.f32 %v2212, 0.0
        %v2245 = vmax.f32 %v2213, 0.0
        %v2246 = vmax.f32 %v2214, 0.0
        %v2247 = vmax.f32 %v2215, 0.0
        %v2248 = vmax.f32 %v2216, 0.0
        %v2249 = vmax.f32 %v2217, 0.0
        %v2250 = vmax.f32 %v2218, 0.0
        %v2251 = vmax.f32 %v2219, 0.0
        %v2252 = vmax.f32 %v2220, 0.0
        %v2253 = vmax.f32 %v2221, 0.0
        %v2254 = vmax.f32 %v2222, 0.0
        %v2255 = vmax.f32 %v2223, 0.0
        %v2256 = vmax.f32 %v2224, 0.0
        %v2257 = vmax.f32 %v2225, 0.0
        %v2258 = vmax.f32 %v2226, 0.0
        %v2259 = vmax.f32 %v2227, 0.0
        %v2260 = vmax.f32 %v2228, 0.0
        %v2261 = vmax.f32 %v2229, 0.0
        %v2262 = vmax.f32 %v2230, 0.0
        %v2263 = vmax.f32 %v2231, 0.0
        %v2264 = vmax.f32 %v2232, 0.0
        %v2265 = vmax.f32 %v2233, 0.0
        %v2266 = vmax.f32 %v2234, 0.0
        %v2267 = vmax.f32 %v2235, 0.0
        %v2268 = vmax.f32 %v2236, 0.0
        %v2269 = vmax.f32 %v2237, 0.0
        %v2270 = vmax.f32 %v2238, 0.0
        %v2271 = vmax.f32 %v2239, 0.0
        %v2272 = vmax.f32 %v2240, 0.0
        %v2273 = vmax.f32 %v2241, 0.0
        %v2274 = vld [vmem:[#allocation9] sm:$0xff]
        %v2275 = vld [vmem:[#allocation9 + $0x8] sm:$0xff]
        %v2276 = vld [vmem:[#allocation9 + $0x10] sm:$0xff]
        %v2277 = vld [vmem:[#allocation9 + $0x18] sm:$0xff]
        %v2278 = vld [vmem:[#allocation9 + $0x20] sm:$0xff]
        %v2279 = vld [vmem:[#allocation9 + $0x28] sm:$0xff]
        %v2280 = vld [vmem:[#allocation9 + $0x30] sm:$0xff]
        %v2281 = vld [vmem:[#allocation9 + $0x38] sm:$0xff]
        %v2282 = vld [vmem:[#allocation9 + $0x40] sm:$0xff]
        %v2283 = vld [vmem:[#allocation9 + $0x48] sm:$0xff]
        %v2284 = vld [vmem:[#allocation9 + $0x50] sm:$0xff]
        %v2285 = vld [vmem:[#allocation9 + $0x58] sm:$0xff]
        %v2286 = vld [vmem:[#allocation9 + $0x60] sm:$0xff]
        %v2287 = vld [vmem:[#allocation9 + $0x68] sm:$0xff]
        %v2288 = vld [vmem:[#allocation9 + $0x70] sm:$0xff]
        %v2289 = vld [vmem:[#allocation9 + $0x78] sm:$0xff]
        %v2290 = vld [vmem:[%s302] sm:$0xff]
        %v2291 = vld [vmem:[%s302 + $0x8] sm:$0xff]
        %v2292 = vld [vmem:[%s302 + $0x10] sm:$0xff]
        %v2293 = vld [vmem:[%s302 + $0x18] sm:$0xff]
        %v2294 = vld [vmem:[%s302 + $0x20] sm:$0xff]
        %v2295 = vld [vmem:[%s302 + $0x28] sm:$0xff]
        %v2296 = vld [vmem:[%s302 + $0x30] sm:$0xff]
        %v2297 = vld [vmem:[%s302 + $0x38] sm:$0xff]
        %v2298 = vld [vmem:[%s302 + $0x40] sm:$0xff]
        %v2299 = vld [vmem:[%s302 + $0x48] sm:$0xff]
        %v2300 = vld [vmem:[%s302 + $0x50] sm:$0xff]
        %v2301 = vld [vmem:[%s302 + $0x58] sm:$0xff]
        %v2302 = vld [vmem:[%s302 + $0x60] sm:$0xff]
        %v2303 = vld [vmem:[%s302 + $0x68] sm:$0xff]
        %v2304 = vld [vmem:[%s302 + $0x70] sm:$0xff]
        %v2305 = vld [vmem:[%s302 + $0x78] sm:$0xff]
        %v2306 = vld [vmem:[%s302 + $0x80] sm:$0xff]
        %v2307 = vld [vmem:[%s302 + $0x88] sm:$0xff]
        %v2308 = vld [vmem:[%s302 + $0x90] sm:$0xff]
        %v2309 = vld [vmem:[%s302 + $0x98] sm:$0xff]
        %v2310 = vld [vmem:[%s302 + $0xa0] sm:$0xff]
        %v2311 = vld [vmem:[%s302 + $0xa8] sm:$0xff]
        %v2312 = vld [vmem:[%s302 + $0xb0] sm:$0xff]
        %v2313 = vld [vmem:[%s302 + $0xb8] sm:$0xff]
        %v2314 = vld [vmem:[%s302 + $0xc0] sm:$0xff]
        %v2315 = vld [vmem:[%s302 + $0xc8] sm:$0xff]
        %v2316 = vld [vmem:[%s302 + $0xd0] sm:$0xff]
        %v2317 = vld [vmem:[%s302 + $0xd8] sm:$0xff]
        %v2318 = vld [vmem:[%s302 + $0xe0] sm:$0xff]
        %v2319 = vld [vmem:[%s302 + $0xe8] sm:$0xff]
        %v2320 = vld [vmem:[%s302 + $0xf0] sm:$0xff]
        %v2321 = vld [vmem:[%s302 + $0xf8] sm:$0xff]
        %v2322 = vld [vmem:[%s6] sm:$0x1]
        %v2324 = vperm.slane %v2322, 0
        %2326 = vmatpush.msra.mxu0 %v2289
        %2327 = vmatpush.msra.mxu0 %v2288
        %2328 = vmatpush.msra.mxu0 %v2287
        %2329 = vmatpush.msra.mxu0 %v2286
        %2330 = vmatpush.msra.mxu0 %v2285
        %2331 = vmatpush.msra.mxu0 %v2284
        %2332 = vmatpush.msra.mxu0 %v2283
        %2333 = vmatpush.msra.mxu0 %v2282
        %2334 = vmatpush.msra.mxu0 %v2281
        %2335 = vmatpush.msra.mxu0 %v2280
        %2336 = vmatpush.msra.mxu0 %v2279
        %2337 = vmatpush.msra.mxu0 %v2278
        %2338 = vmatpush.msra.mxu0 %v2277
        %2339 = vmatpush.msra.mxu0 %v2276
        %2340 = vmatpush.msra.mxu0 %v2275
        %2341 = vmatpush.msra.mxu0 %v2274
        %2342 = vmatmul.f32.gmra.mxu0 %v2242
        %v2343 = vpop.f32.mrf.mxu0
        %v2344 = vadd.f32 %v2324, %v2343
        %2345 = vmatmul.f32.gmra.mxu0 %v2243
        %v2346 = vpop.f32.mrf.mxu0
        %v2347 = vadd.f32 %v2324, %v2346
        %2348 = vmatmul.f32.gmra.mxu0 %v2244
        %v2349 = vpop.f32.mrf.mxu0
        %v2350 = vadd.f32 %v2324, %v2349
        %2351 = vmatmul.f32.gmra.mxu0 %v2245
        %v2352 = vpop.f32.mrf.mxu0
        %v2353 = vadd.f32 %v2324, %v2352
        %2354 = vmatmul.f32.gmra.mxu0 %v2246
        %v2355 = vpop.f32.mrf.mxu0
        %v2356 = vadd.f32 %v2324, %v2355
        %2357 = vmatmul.f32.gmra.mxu0 %v2247
        %v2358 = vpop.f32.mrf.mxu0
        %v2359 = vadd.f32 %v2324, %v2358
        %2360 = vmatmul.f32.gmra.mxu0 %v2248
        %v2361 = vpop.f32.mrf.mxu0
        %v2362 = vadd.f32 %v2324, %v2361
        %2363 = vmatmul.f32.gmra.mxu0 %v2249
        %v2364 = vpop.f32.mrf.mxu0
        %v2365 = vadd.f32 %v2324, %v2364
        %2366 = vmatmul.f32.gmra.mxu0 %v2250
        %v2367 = vpop.f32.mrf.mxu0
        %v2368 = vadd.f32 %v2324, %v2367
        %2369 = vmatmul.f32.gmra.mxu0 %v2251
        %v2370 = vpop.f32.mrf.mxu0
        %v2371 = vadd.f32 %v2324, %v2370
        %2372 = vmatmul.f32.gmra.mxu0 %v2252
        %v2373 = vpop.f32.mrf.mxu0
        %v2374 = vadd.f32 %v2324, %v2373
        %2375 = vmatmul.f32.gmra.mxu0 %v2253
        %v2376 = vpop.f32.mrf.mxu0
        %v2377 = vadd.f32 %v2324, %v2376
        %2378 = vmatmul.f32.gmra.mxu0 %v2254
        %v2379 = vpop.f32.mrf.mxu0
        %v2380 = vadd.f32 %v2324, %v2379
        %2381 = vmatmul.f32.gmra.mxu0 %v2255
        %v2382 = vpop.f32.mrf.mxu0
        %v2383 = vadd.f32 %v2324, %v2382
        %2384 = vmatmul.f32.gmra.mxu0 %v2256
        %v2385 = vpop.f32.mrf.mxu0
        %v2386 = vadd.f32 %v2324, %v2385
        %2387 = vmatmul.f32.gmra.mxu0 %v2257
        %v2388 = vpop.f32.mrf.mxu0
        %v2389 = vadd.f32 %v2324, %v2388
        %2390 = vmatmul.f32.gmra.mxu0 %v2258
        %v2391 = vpop.f32.mrf.mxu0
        %v2392 = vadd.f32 %v2324, %v2391
        %2393 = vmatmul.f32.gmra.mxu0 %v2259
        %v2394 = vpop.f32.mrf.mxu0
        %v2395 = vadd.f32 %v2324, %v2394
        %2396 = vmatmul.f32.gmra.mxu0 %v2260
        %v2397 = vpop.f32.mrf.mxu0
        %v2398 = vadd.f32 %v2324, %v2397
        %2399 = vmatmul.f32.gmra.mxu0 %v2261
        %v2400 = vpop.f32.mrf.mxu0
        %v2401 = vadd.f32 %v2324, %v2400
        %2402 = vmatmul.f32.gmra.mxu0 %v2262
        %v2403 = vpop.f32.mrf.mxu0
        %v2404 = vadd.f32 %v2324, %v2403
        %2405 = vmatmul.f32.gmra.mxu0 %v2263
        %v2406 = vpop.f32.mrf.mxu0
        %v2407 = vadd.f32 %v2324, %v2406
        %2408 = vmatmul.f32.gmra.mxu0 %v2264
        %v2409 = vpop.f32.mrf.mxu0
        %v2410 = vadd.f32 %v2324, %v2409
        %2411 = vmatmul.f32.gmra.mxu0 %v2265
        %v2412 = vpop.f32.mrf.mxu0
        %v2413 = vadd.f32 %v2324, %v2412
        %2414 = vmatmul.f32.gmra.mxu0 %v2266
        %v2415 = vpop.f32.mrf.mxu0
        %v2416 = vadd.f32 %v2324, %v2415
        %2417 = vmatmul.f32.gmra.mxu0 %v2267
        %v2418 = vpop.f32.mrf.mxu0
        %v2419 = vadd.f32 %v2324, %v2418
        %2420 = vmatmul.f32.gmra.mxu0 %v2268
        %v2421 = vpop.f32.mrf.mxu0
        %v2422 = vadd.f32 %v2324, %v2421
        %2423 = vmatmul.f32.gmra.mxu0 %v2269
        %v2424 = vpop.f32.mrf.mxu0
        %v2425 = vadd.f32 %v2324, %v2424
        %2426 = vmatmul.f32.gmra.mxu0 %v2270
        %v2427 = vpop.f32.mrf.mxu0
        %v2428 = vadd.f32 %v2324, %v2427
        %2429 = vmatmul.f32.gmra.mxu0 %v2271
        %v2430 = vpop.f32.mrf.mxu0
        %v2431 = vadd.f32 %v2324, %v2430
        %2432 = vmatmul.f32.gmra.mxu0 %v2272
        %v2433 = vpop.f32.mrf.mxu0
        %v2434 = vadd.f32 %v2324, %v2433
        %2435 = vmatmul.f32.gmra.mxu0 %v2273
        %v2436 = vpop.f32.mrf.mxu0
        %v2437 = vadd.f32 %v2324, %v2436
        %2438 = vdwg.mxu0
        %v2439 = vadd.f32 %v2344, %v2290
        %v2440 = vadd.f32 %v2347, %v2291
        %v2441 = vadd.f32 %v2350, %v2292
        %v2442 = vadd.f32 %v2353, %v2293
        %v2443 = vadd.f32 %v2356, %v2294
        %v2444 = vadd.f32 %v2359, %v2295
        %v2445 = vadd.f32 %v2362, %v2296
        %v2446 = vadd.f32 %v2365, %v2297
        %v2447 = vadd.f32 %v2368, %v2298
        %v2448 = vadd.f32 %v2371, %v2299
        %v2449 = vadd.f32 %v2374, %v2300
        %v2450 = vadd.f32 %v2377, %v2301
        %v2451 = vadd.f32 %v2380, %v2302
        %v2452 = vadd.f32 %v2383, %v2303
        %v2453 = vadd.f32 %v2386, %v2304
        %v2454 = vadd.f32 %v2389, %v2305
        %v2455 = vadd.f32 %v2392, %v2306
        %v2456 = vadd.f32 %v2395, %v2307
        %v2457 = vadd.f32 %v2398, %v2308
        %v2458 = vadd.f32 %v2401, %v2309
        %v2459 = vadd.f32 %v2404, %v2310
        %v2460 = vadd.f32 %v2407, %v2311
        %v2461 = vadd.f32 %v2410, %v2312
        %v2462 = vadd.f32 %v2413, %v2313
        %v2463 = vadd.f32 %v2416, %v2314
        %v2464 = vadd.f32 %v2419, %v2315
        %v2465 = vadd.f32 %v2422, %v2316
        %v2466 = vadd.f32 %v2425, %v2317
        %v2467 = vadd.f32 %v2428, %v2318
        %v2468 = vadd.f32 %v2431, %v2319
        %v2469 = vadd.f32 %v2434, %v2320
        %v2470 = vadd.f32 %v2437, %v2321
        %v2471 = vmax.f32 %v2439, 0.0
        %v2472 = vmax.f32 %v2440, 0.0
        %v2473 = vmax.f32 %v2441, 0.0
        %v2474 = vmax.f32 %v2442, 0.0
        %v2475 = vmax.f32 %v2443, 0.0
        %v2476 = vmax.f32 %v2444, 0.0
        %v2477 = vmax.f32 %v2445, 0.0
        %v2478 = vmax.f32 %v2446, 0.0
        %v2479 = vmax.f32 %v2447, 0.0
        %v2480 = vmax.f32 %v2448, 0.0
        %v2481 = vmax.f32 %v2449, 0.0
        %v2482 = vmax.f32 %v2450, 0.0
        %v2483 = vmax.f32 %v2451, 0.0
        %v2484 = vmax.f32 %v2452, 0.0
        %v2485 = vmax.f32 %v2453, 0.0
        %v2486 = vmax.f32 %v2454, 0.0
        %v2487 = vmax.f32 %v2455, 0.0
        %v2488 = vmax.f32 %v2456, 0.0
        %v2489 = vmax.f32 %v2457, 0.0
        %v2490 = vmax.f32 %v2458, 0.0
        %v2491 = vmax.f32 %v2459, 0.0
        %v2492 = vmax.f32 %v2460, 0.0
        %v2493 = vmax.f32 %v2461, 0.0
        %v2494 = vmax.f32 %v2462, 0.0
        %v2495 = vmax.f32 %v2463, 0.0
        %v2496 = vmax.f32 %v2464, 0.0
        %v2497 = vmax.f32 %v2465, 0.0
        %v2498 = vmax.f32 %v2466, 0.0
        %v2499 = vmax.f32 %v2467, 0.0
        %v2500 = vmax.f32 %v2468, 0.0
        %v2501 = vmax.f32 %v2469, 0.0
        %v2502 = vmax.f32 %v2470, 0.0
        %2503 = vst [vmem:[%s348] sm:$0xff] %v2471
        %2504 = vst [vmem:[%s348 + $0x8] sm:$0xff] %v2472
        %2505 = vst [vmem:[%s348 + $0x10] sm:$0xff] %v2473
        %2506 = vst [vmem:[%s348 + $0x18] sm:$0xff] %v2474
        %2507 = vst [vmem:[%s348 + $0x20] sm:$0xff] %v2475
        %2508 = vst [vmem:[%s348 + $0x28] sm:$0xff] %v2476
        %2509 = vst [vmem:[%s348 + $0x30] sm:$0xff] %v2477
        %2510 = vst [vmem:[%s348 + $0x38] sm:$0xff] %v2478
        %2511 = vst [vmem:[%s348 + $0x40] sm:$0xff] %v2479
        %2512 = vst [vmem:[%s348 + $0x48] sm:$0xff] %v2480
        %2513 = vst [vmem:[%s348 + $0x50] sm:$0xff] %v2481
        %2514 = vst [vmem:[%s348 + $0x58] sm:$0xff] %v2482
        %2515 = vst [vmem:[%s348 + $0x60] sm:$0xff] %v2483
        %2516 = vst [vmem:[%s348 + $0x68] sm:$0xff] %v2484
        %2517 = vst [vmem:[%s348 + $0x70] sm:$0xff] %v2485
        %2518 = vst [vmem:[%s348 + $0x78] sm:$0xff] %v2486
        %2519 = vst [vmem:[%s348 + $0x80] sm:$0xff] %v2487
        %2520 = vst [vmem:[%s348 + $0x88] sm:$0xff] %v2488
        %2521 = vst [vmem:[%s348 + $0x90] sm:$0xff] %v2489
        %2522 = vst [vmem:[%s348 + $0x98] sm:$0xff] %v2490
        %2523 = vst [vmem:[%s348 + $0xa0] sm:$0xff] %v2491
        %2524 = vst [vmem:[%s348 + $0xa8] sm:$0xff] %v2492
        %2525 = vst [vmem:[%s348 + $0xb0] sm:$0xff] %v2493
        %2526 = vst [vmem:[%s348 + $0xb8] sm:$0xff] %v2494
        %2527 = vst [vmem:[%s348 + $0xc0] sm:$0xff] %v2495
        %2528 = vst [vmem:[%s348 + $0xc8] sm:$0xff] %v2496
        %2529 = vst [vmem:[%s348 + $0xd0] sm:$0xff] %v2497
        %2530 = vst [vmem:[%s348 + $0xd8] sm:$0xff] %v2498
        %2531 = vst [vmem:[%s348 + $0xe0] sm:$0xff] %v2499
        %2532 = vst [vmem:[%s348 + $0xe8] sm:$0xff] %v2500
        %2533 = vst [vmem:[%s348 + $0xf0] sm:$0xff] %v2501
        %2534 = vst [vmem:[%s348 + $0xf8] sm:$0xff] %v2502
        %s2535 = sand.u32 %s186, 1
        %s2536 = scalar_lea.sflag [#allocation5], %s2535
        %s2537 = sand.u32 %s186, 1
        %s2538 = smul.addr %s2537, 256
        %s2539 = scalar_lea.vmem [#allocation11], %s2538
        // Predicated region
        $region65: #{tpu_custom_call.1} parent=47 // pred_check
          %p2540 = pneg %p196
        $region66: #{tpu_custom_call.1} parent=47 // pred_check_branch
          %2542 = sbr.rel (%p2540) target = $region68
        $region67: #{tpu_custom_call.1} parent=47 // pred_region
          %2544 = vsyncadd %s2536, 0
          %s2545 = smul.addr %s26, 32
          %s2546 = smul.addr %s2545, 8
          %s2547 = scalar_lea.hbm %s7, %s2546
          %s2548 = sshll.u32 %s2539, 4
          %s2549 = int_to_ptr.vmem [resolvable:$true] %s2548
          %s2550 = sshll.u32 %s2547, 4
          %s2551 = int_to_ptr.hbm [resolvable:$true] %s2550
          %2556 = dma.vmem_to_hbm [thread:$0]  %s2549, 4096, %s2551, %s2536, 128, 128, 8
        $region68: #{tpu_custom_call.1} parent=47 // pred_fallthru
          _
      $region48: #{tpu_custom_call.1} parent=5 // pred_fallthru
        _
      %p2557 = scmp.le.s32.totalorder 2, %s21
      // Predicated region
      $region69: #{tpu_custom_call.1} parent=5 // pred_check
        %p2558 = pneg %p2557
      $region70: #{tpu_custom_call.1} parent=5 // pred_check_branch
        %2560 = sbr.rel (%p2558) target = $region72
      $region71: #{tpu_custom_call.1} parent=5 // pred_region
        %s2561 = ssub.s32 %s21, 2
        // Predicated region
        $region73: #{tpu_custom_call.1} parent=71 // pred_check
          %p2562 = pneg %p202
        $region74: #{tpu_custom_call.1} parent=71 // pred_check_branch
          %2564 = sbr.rel (%p2562) target = $region76
        $region75: #{tpu_custom_call.1} parent=71 // pred_region
          %s2565 = sand.u32 %s187, 1
          %s2566 = scalar_lea.sflag [#allocation5], %s2565
          %s2567 = sand.u32 %s187, 1
          %s2568 = smul.addr %s2567, 256
          %s2569 = scalar_lea.vmem [#allocation11], %s2568
          %2571 = dma.done %s2566, 4096
        $region76: #{tpu_custom_call.1} parent=71 // pred_fallthru
          _
      $region72: #{tpu_custom_call.1} parent=5 // pred_fallthru
        _
    $region6: #{tpu_custom_call.1} parent=1 // loop_footer
      %s25 = sadd.s32 1, %s21
    $region7: #{tpu_custom_call.1} parent=1 // loop_footer_branch
      %20 = sbr.rel target = $region3
    $region8: #{tpu_custom_call.1} parent=1 // loop_exit
      _
    %2572 = vsyncpa [#allocation4], 1
    %s2573 = scalar_lea.sflag [#allocation4], 1
    %2574 = vsyncpa %s2573, 1
    %2575 = vsyncpa [#allocation7], 1
    %2576 = vsyncpa [#allocation10], 1
    %2577 = vsyncpa [#allocation5], 1
    %s2578 = scalar_lea.sflag [#allocation5], 1
    %2579 = vsyncpa %s2578, 1

</llo_original>
